<compile_context>
chip_gen: v7x
topology: tpu7x:2x2x1
jax: 0.10.0
libtpu: 0.0.40
codegen_flags: <defaults>
</compile_context>

<pallas_src>
import functools

import jax
import jax.numpy as jnp
from jax import lax
from jax.experimental import pallas as pl
from jax.experimental.pallas import tpu as pltpu


def _round_up(x, m):
    return ((x + m - 1) // m) * m


# ----------------------------- Pallas kernel ------------------------------ #
def gru_layer_kernel(x_ref, wih_ref, whh_ref, bgi_ref, bhn_ref, y_ref,
                     h_ref, gi_ref, *, compute_dtype, inner_unroll):
    """One GRU layer over one (batch-block, time-chunk) grid cell.

    x_ref  : (T, bt, in_pad)      input time-chunk (time-major, f32)
    wih_ref: (in_pad, 3*H_pad)    input->hidden weights, gates [r|z|n], bf16
    whh_ref: (H_pad, 3*H_pad)     hidden->hidden weights, bf16
    bgi_ref: (1, 3*H_pad)         b_ih (+ b_hh for r,z gates), f32
    bhn_ref: (1, H_pad)           b_hh for the n gate, f32
    y_ref  : (T, bt, H_pad)       all hidden states for this chunk (f32)
    h_ref  : (bt, H_pad) scratch  hidden state carried across time chunks
    gi_ref : (T, bt, 3*H_pad)     staging for the hoisted input projection
    """
    T, bt, in_pad = x_ref.shape
    H_pad = whh_ref.shape[0]

    # (Re)initialize the carried hidden state at the first time chunk of each
    # batch block (time is the minor/innermost grid axis).
    @pl.when(pl.program_id(1) == 0)
    def _():
        h_ref[...] = jnp.zeros_like(h_ref)

    # ---- Hoisted input projection (no sequential dependence): one big MXU
    # matmul for the whole chunk, bf16 operands, f32 accumulation, bias folded
    # in once per chunk.
    x_flat = x_ref[...].reshape(T * bt, in_pad).astype(compute_dtype)
    gi = jnp.dot(x_flat, wih_ref[...], preferred_element_type=jnp.float32)
    gi_ref[...] = (gi + bgi_ref[...]).reshape(T, bt, 3 * H_pad)

    whh = whh_ref[...]
    # Loop-invariant broadcast hoisted out of the recurrence (JAX does not CSE
    # broadcast_in_dim).
    bhn = jnp.broadcast_to(bhn_ref[...], (bt, H_pad))

    def step(t, h):
        gi_t = gi_ref[t]                                          # (bt, 3*H_pad)
        gh = jnp.dot(h.astype(compute_dtype), whh,
                     preferred_element_type=jnp.float32)          # (bt, 3*H_pad)
        # Gate slices are lane-aligned (multiples of 128): pure VPU/EUP work.
        r = jax.nn.sigmoid(gi_t[:, :H_pad] + gh[:, :H_pad])
        z = jax.nn.sigmoid(gi_t[:, H_pad:2 * H_pad] + gh[:, H_pad:2 * H_pad])
        n = jnp.tanh(gi_t[:, 2 * H_pad:] + r * (gh[:, 2 * H_pad:] + bhn))
        h = (1.0 - z) * n + z * h
        y_ref[t] = h.astype(y_ref.dtype)   # lane-dense, unmasked (bt,H_pad) store
        return h

    def unrolled_body(c, h):
        base = c * inner_unroll
        for u in range(inner_unroll):      # static unroll -> MXU/EUP/store overlap
            h = step(base + u, h)
        return h

    h_ref[...] = lax.fori_loop(0, T // inner_unroll, unrolled_body, h_ref[...])


def gru_layer(x_tm, wih, whh, bgi, bhn, *, time_chunk, batch_tile,
              inner_unroll=8):
    """Run one GRU layer via pallas_call.

    x_tm: (S_pad, B_pad, in_pad) f32 time-major input (padded).
    wih : (in_pad, 3*H_pad)  whh: (H_pad, 3*H_pad)  (pre-packed, compute dtype)
    bgi : (1, 3*H_pad)       bhn: (1, H_pad)        (f32)
    Returns (S_pad, B_pad, H_pad) f32.
    """
    S_pad, B_pad, in_pad = x_tm.shape
    H_pad = whh.shape[0]
    T, bt = time_chunk, batch_tile
    assert S_pad % T == 0 and B_pad % bt == 0 and T % inner_unroll == 0
    compute_dtype = wih.dtype

    kernel = functools.partial(gru_layer_kernel,
                               compute_dtype=compute_dtype,
                               inner_unroll=inner_unroll)

    grid = (B_pad // bt, S_pad // T)

    # VMEM budget (resident weights + double-buffered x/y blocks + scratch),
    # capped at 60 MiB so the same tiling also fits v7x (64 MiB physical).
    wbytes = jnp.dtype(compute_dtype).itemsize
    est = (in_pad * 3 * H_pad + H_pad * 3 * H_pad) * wbytes      # resident weights
    est += (3 * H_pad + H_pad) * 4                               # biases
    est += 2 * T * bt * in_pad * 4                               # x double-buffer
    est += 2 * T * bt * H_pad * 4                                # y double-buffer
    est += T * bt * 3 * H_pad * 4 + bt * H_pad * 4               # gi + h scratch
    vmem_limit = int(min(max(2 * est + (2 << 20), 16 << 20), 60 << 20))

    return pl.pallas_call(
        kernel,
        out_shape=jax.ShapeDtypeStruct((S_pad, B_pad, H_pad), jnp.float32),
        grid_spec=pltpu.PrefetchScalarGridSpec(
            num_scalar_prefetch=0,
            grid=grid,
            in_specs=[
                pl.BlockSpec((T, bt, in_pad), lambda b, t: (t, b, 0)),
                pl.BlockSpec((in_pad, 3 * H_pad), lambda b, t: (0, 0)),
                pl.BlockSpec((H_pad, 3 * H_pad), lambda b, t: (0, 0)),
                pl.BlockSpec((1, 3 * H_pad), lambda b, t: (0, 0)),
                pl.BlockSpec((1, H_pad), lambda b, t: (0, 0)),
            ],
            out_specs=pl.BlockSpec((T, bt, H_pad), lambda b, t: (t, b, 0)),
            scratch_shapes=[
                pltpu.VMEM((bt, H_pad), jnp.float32),            # carried h
                pltpu.VMEM((T, bt, 3 * H_pad), jnp.float32),     # hoisted gi
            ],
        ),
        compiler_params=pltpu.CompilerParams(
            dimension_semantics=("parallel", "arbitrary"),
            vmem_limit_bytes=vmem_limit,
        ),
    )(x_tm.astype(jnp.float32), wih, whh, bgi, bhn)


# --------------------------- Parameter preparation ------------------------- #
def _pack_gate_weights(w, in_pad, H_pad):
    """(3H, in_sz) PyTorch weight -> (in_pad, 3*H_pad) transposed, lane-aligned
    per-gate blocks [r | z | n] padded with zeros."""
    threeH, in_sz = w.shape
    H = threeH // 3
    gates = []
    for g in range(3):
        wg = jnp.transpose(w[g * H:(g + 1) * H, :])              # (in_sz, H)
        wg = jnp.pad(wg, ((0, in_pad - in_sz), (0, H_pad - H)))
        gates.append(wg)
    return jnp.concatenate(gates, axis=1)


def prep_encoder_params(emb, layers, compute_dtype=jnp.bfloat16):
    """One-time transpose / repack / pad / cast of all parameters."""
    E = emb.shape[1]
    H = layers[0][1].shape[1]            # w_hh: (3H, H)
    E_pad = _round_up(E, 128)
    H_pad = _round_up(H, 128)

    emb_p = jnp.pad(emb.astype(jnp.float32), ((0, 0), (0, E_pad - E)))

    def pad_h(v):
        return jnp.pad(v, (0, H_pad - H))

    prepped = []
    for li, (w_ih, w_hh, b_ih, b_hh) in enumerate(layers):
        in_pad = E_pad if li == 0 else H_pad
        wih_p = _pack_gate_weights(w_ih, in_pad, H_pad).astype(compute_dtype)
        whh_p = _pack_gate_weights(w_hh, H_pad, H_pad).astype(compute_dtype)
        b_ih_r, b_ih_z, b_ih_n = jnp.split(b_ih, 3)
        b_hh_r, b_hh_z, b_hh_n = jnp.split(b_hh, 3)
        # b_ih+b_hh pre-combined for r,z; b_hh_n must stay inside r*(.) term.
        bgi = jnp.concatenate([pad_h(b_ih_r + b_hh_r),
                               pad_h(b_ih_z + b_hh_z),
                               pad_h(b_ih_n)]).reshape(1, -1).astype(jnp.float32)
        bhn = pad_h(b_hh_n).reshape(1, -1).astype(jnp.float32)
        prepped.append((wih_p, whh_p, bgi, bhn))
    return emb_p, prepped, (E, H, E_pad, H_pad)


def _pick_time_chunk(S, bt, in_pad, H_pad, budget_bytes=16 << 20):
    """Time-chunk length: multiple of 8 that divides round_up(S, 8) (so the
    sequence is never over-padded), sized against a conservative VMEM budget
    so the kernel stays well under v7x's 64 MiB with double-buffering."""
    per_t = bt * (2 * in_pad * 4 + 2 * H_pad * 4 + 3 * H_pad * 4)
    t_max = max(8, min(512, budget_bytes // max(per_t, 1)))
    S8 = _round_up(S, 8)
    best, t = 8, 8
    while t <= min(t_max, S8):
        if S8 % t == 0:
            best = t
        t += 8
    return best


def _pick_batch_tile(B_pad):
    """Largest multiple-of-8 divisor of B_pad up to 128 (full MXU tiles)."""
    if B_pad <= 128:
        return B_pad
    best, t = 8, 8
    while t <= 128:
        if B_pad % t == 0:
            best = t
        t += 8
    return best


# ------------------------------ Encoder glue ------------------------------ #
def init_params(key, vocab_size, embed_size, hidden_size, n_layers):
    keys = jax.random.split(key, 1 + 4 * n_layers)
    emb = 0.1 * jax.random.normal(keys[0], (vocab_size, embed_size), jnp.float32)
    emb = emb.at[1].set(0.0)  # padding_idx=1 -> zero row
    layers = []
    k = 1
    for l in range(n_layers):
        in_sz = embed_size if l == 0 else hidden_size
        scale = 1.0 / jnp.sqrt(hidden_size)
        w_ih = scale * jax.random.normal(keys[k + 0], (3 * hidden_size, in_sz), jnp.float32)
        w_hh = scale * jax.random.normal(keys[k + 1], (3 * hidden_size, hidden_size), jnp.float32)
        b_ih = scale * jax.random.normal(keys[k + 2], (3 * hidden_size,), jnp.float32)
        b_hh = scale * jax.random.normal(keys[k + 3], (3 * hidden_size,), jnp.float32)
        layers.append((w_ih, w_hh, b_ih, b_hh))
        k += 4
    return emb, layers


def encoder_gru_forward(src, emb_p, layers_p, dims):
    """src: (B, S) int32 -> (encoder_outputs (B,S,H), h_n (L,B,H))."""
    E, H, E_pad, H_pad = dims
    B, S = src.shape

    B_pad = _round_up(B, 8)
    bt = _pick_batch_tile(B_pad)
    T = _pick_time_chunk(S, bt, max(E_pad, H_pad), H_pad)
    S_pad = _round_up(S, T)

    # Embedding lookup + dropout (eval mode -> identity).
    embedded = jnp.take(emb_p, src, axis=0)              # (B, S, E_pad)
    # TODO(synk): training-mode dropout (on embeddings / between layers) not modeled.
    x = jnp.transpose(embedded, (1, 0, 2))               # (S, B, E_pad) time-major
    x = jnp.pad(x, ((0, S_pad - S), (0, B_pad - B), (0, 0)))

    # TODO(synk): fuse all layers into one pallas_call (weights VMEM-resident,
    # activations never round-tripping through HBM between layers).
    h_last = []
    for (wih, whh, bgi, bhn) in layers_p:
        x = gru_layer(x, wih, whh, bgi, bhn, time_chunk=T, batch_tile=bt)
        h_last.append(x[S - 1, :B, :H])                  # last *valid* time step

    encoder_outputs = jnp.transpose(x[:S, :B, :H], (1, 0, 2))    # (B, S, H)
    h_n = jnp.stack(h_last, axis=0)                              # (L, B, H)
    return encoder_outputs, h_n


# -------------------------- pure-JAX reference ----------------------------- #
def gru_layer_ref(x_tm, w_ih, w_hh, b_ih, b_hh, compute_dtype):
    H = w_hh.shape[1]
    wih_t = jnp.transpose(w_ih).astype(compute_dtype)
    whh_t = jnp.transpose(w_hh).astype(compute_dtype)

    def step(h, x_t):
        gi = jnp.dot(x_t.astype(compute_dtype), wih_t,
                     preferred_element_type=jnp.float32) + b_ih
        gh = jnp.dot(h.astype(compute_dtype), whh_t,
                     preferred_element_type=jnp.float32) + b_hh
        i_r, i_z, i_n = gi[:, :H], gi[:, H:2 * H], gi[:, 2 * H:]
        h_r, h_z, h_n = gh[:, :H], gh[:, H:2 * H], gh[:, 2 * H:]
        r = jax.nn.sigmoid(i_r + h_r)
        z = jax.nn.sigmoid(i_z + h_z)
        n = jnp.tanh(i_n + r * h_n)
        h_new = (1.0 - z) * n + z * h
        return h_new, h_new

    h0 = jnp.zeros((x_tm.shape[1], H), jnp.float32)
    _, ys = lax.scan(step, h0, x_tm)
    return ys


def encoder_gru_ref(src, emb, layers, compute_dtype):
    embedded = jnp.take(emb, src, axis=0)
    x_tm = jnp.transpose(embedded, (1, 0, 2))
    h_last = []
    for (w_ih, w_hh, b_ih, b_hh) in layers:
        x_tm = gru_layer_ref(x_tm, w_ih, w_hh, b_ih, b_hh, compute_dtype)
        h_last.append(x_tm[-1])
    return jnp.transpose(x_tm, (1, 0, 2)), jnp.stack(h_last, axis=0)


# --------------------------------- main ------------------------------------ #
if __name__ == "__main__":
    VOCAB, EMBED, HIDDEN, N_LAYERS = 16, 32, 32, 2
    B, S = 2, 8

    key = jax.random.PRNGKey(0)
    k_param, k_src = jax.random.split(key)
    emb, layers = init_params(k_param, VOCAB, EMBED, HIDDEN, N_LAYERS)
    src = jax.random.randint(k_src, (B, S), 0, VOCAB, dtype=jnp.int32)

    # bf16 MXU operands, f32 accumulation + f32 gate math (v6e/v7x guidance).
    COMPUTE_DTYPE = jnp.bfloat16
    emb_p, layers_p, dims = prep_encoder_params(emb, layers, compute_dtype=COMPUTE_DTYPE)

    enc_out, h_n = encoder_gru_forward(src, emb_p, layers_p, dims)
    enc_out = jax.block_until_ready(enc_out)
    h_n = jax.block_until_ready(h_n)

    # Reference applies the same bf16-operand / f32-accumulate matmul casts.
    ref_out, ref_hn = encoder_gru_ref(src, emb, layers, COMPUTE_DTYPE)

    assert enc_out.shape == (B, S, HIDDEN), enc_out.shape
    assert h_n.shape == (N_LAYERS, B, HIDDEN), h_n.shape
    assert jnp.allclose(enc_out, ref_out, atol=2e-3, rtol=2e-3), \
        float(jnp.max(jnp.abs(enc_out - ref_out)))
    assert jnp.allclose(h_n, ref_hn, atol=2e-3, rtol=2e-3), \
        float(jnp.max(jnp.abs(h_n - ref_hn)))

    print("KERNEL_OK")
</pallas_src>

<mosaic_0001>
module attributes {stable_mosaic.version = 11 : i64} {
  func.func @gru_layer_kernel(%arg0: i32, %arg1: i32, %arg2: memref<8x8x128xf32, #tpu.memory_space<vmem>>, %arg3: memref<128x384xbf16, #tpu.memory_space<vmem>>, %arg4: memref<128x384xbf16, #tpu.memory_space<vmem>>, %arg5: memref<1x384xf32, #tpu.memory_space<vmem>>, %arg6: memref<1x128xf32, #tpu.memory_space<vmem>>, %arg7: memref<8x8x128xf32, #tpu.memory_space<vmem>>, %arg8: memref<8x128xf32, #tpu.memory_space<vmem>>, %arg9: memref<8x8x384xf32, #tpu.memory_space<vmem>>) attributes {dimension_semantics = [#tpu.dimension_semantics<parallel>, #tpu.dimension_semantics<arbitrary>], iteration_bounds = array<i64: 1, 1>, scalar_prefetch = 0 : i64, scratch_operands = 2 : i64, tpu.core_type = #tpu.core_type<tc>, window_params = [{transform_indices = @transform_0, window_bounds = array<i64: 8, 8, 128>}, {pipeline_mode = #tpu.pipeline_mode<synchronous>, transform_indices = @transform_1, window_bounds = array<i64: 128, 384>}, {pipeline_mode = #tpu.pipeline_mode<synchronous>, transform_indices = @transform_2, window_bounds = array<i64: 128, 384>}, {pipeline_mode = #tpu.pipeline_mode<synchronous>, transform_indices = @transform_3, window_bounds = array<i64: 1, 384>}, {pipeline_mode = #tpu.pipeline_mode<synchronous>, transform_indices = @transform_4, window_bounds = array<i64: 1, 128>}, {transform_indices = @transform_5, window_bounds = array<i64: 8, 8, 128>}]} {
    %c0_i32 = arith.constant 0 : i32
    %0 = arith.cmpi eq, %arg1, %c0_i32 : i32
    %1 = arith.extui %0 : i1 to i32
    %c0_i32_0 = arith.constant 0 : i32
    %2 = arith.cmpi ne, %1, %c0_i32_0 : i32
    scf.if %2 {
      %cst_85 = arith.constant 0.000000e+00 : f32
      %316 = vector.broadcast %cst_85 : f32 to vector<8x128xf32>
      %c0_86 = arith.constant 0 : index
      %c0_87 = arith.constant 0 : index
      %317 = vector.load %arg8[%c0_86, %c0_87] : memref<8x128xf32, #tpu.memory_space<vmem>>, vector<8x128xf32>
      tpu.vector_store %arg8[%c0_86, %c0_87], %316 {strides = array<i32>} : memref<8x128xf32, #tpu.memory_space<vmem>>, vector<8x128xf32>,
    } else {
    }
    %c0 = arith.constant 0 : index
    %c0_1 = arith.constant 0 : index
    %c0_2 = arith.constant 0 : index
    %3 = vector.load %arg2[%c0, %c0_1, %c0_2] : memref<8x8x128xf32, #tpu.memory_space<vmem>>, vector<8x8x128xf32>
    %4 = vector.shape_cast %3 : vector<8x8x128xf32> to vector<64x128xf32>
    %5 = arith.truncf %4 : vector<64x128xf32> to vector<64x128xbf16>
    %c0_3 = arith.constant 0 : index
    %c0_4 = arith.constant 0 : index
    %6 = vector.load %arg3[%c0_3, %c0_4] : memref<128x384xbf16, #tpu.memory_space<vmem>>, vector<128x384xbf16>
    %cst = arith.constant dense<0.000000e+00> : vector<64x384xf32>
    %7 = tpu.matmul %5, %6, %cst {dimension_numbers = #tpu.dot_dimension_numbers<[1], [0], [0], [1], [0, 0, 1, 1], [], []>} : vector<64x128xbf16>, vector<128x384xbf16>, vector<64x384xf32> -> vector<64x384xf32>
    %c0_5 = arith.constant 0 : index
    %c0_6 = arith.constant 0 : index
    %8 = vector.load %arg5[%c0_5, %c0_6] : memref<1x384xf32, #tpu.memory_space<vmem>>, vector<1x384xf32>
    %9 = vector.broadcast %8 : vector<1x384xf32> to vector<64x384xf32>
    %10 = arith.addf %7, %9 : vector<64x384xf32>
    %11 = vector.shape_cast %10 : vector<64x384xf32> to vector<8x8x384xf32>
    %c0_7 = arith.constant 0 : index
    %c0_8 = arith.constant 0 : index
    %c0_9 = arith.constant 0 : index
    %12 = vector.load %arg9[%c0_7, %c0_8, %c0_9] : memref<8x8x384xf32, #tpu.memory_space<vmem>>, vector<8x8x384xf32>
    tpu.vector_store %arg9[%c0_7, %c0_8, %c0_9], %11 {strides = array<i32>} : memref<8x8x384xf32, #tpu.memory_space<vmem>>, vector<8x8x384xf32>,
    %c0_10 = arith.constant 0 : index
    %c0_11 = arith.constant 0 : index
    %13 = vector.load %arg4[%c0_10, %c0_11] : memref<128x384xbf16, #tpu.memory_space<vmem>>, vector<128x384xbf16>
    %c0_12 = arith.constant 0 : index
    %c0_13 = arith.constant 0 : index
    %14 = vector.load %arg6[%c0_12, %c0_13] : memref<1x128xf32, #tpu.memory_space<vmem>>, vector<1x128xf32>
    %15 = vector.shape_cast %14 : vector<1x128xf32> to vector<1x128xf32>
    %16 = vector.broadcast %15 : vector<1x128xf32> to vector<8x128xf32>
    %c0_14 = arith.constant 0 : index
    %c0_15 = arith.constant 0 : index
    %17 = vector.load %arg8[%c0_14, %c0_15] : memref<8x128xf32, #tpu.memory_space<vmem>>, vector<8x128xf32>
    %c0_i32_16 = arith.constant 0 : i32
    %c8_i32 = arith.constant 8 : i32
    %18 = arith.muli %c0_i32_16, %c8_i32 : i32
    %c0_i32_17 = arith.constant 0 : i32
    %19 = arith.addi %18, %c0_i32_17 : i32
    %20 = arith.index_cast %19 : i32 to index
    %c0_18 = arith.constant 0 : index
    %c0_19 = arith.constant 0 : index
    %21 = vector.load %arg9[%20, %c0_18, %c0_19] : memref<8x8x384xf32, #tpu.memory_space<vmem>>, vector<1x8x384xf32>
    %22 = vector.shape_cast %21 : vector<1x8x384xf32> to vector<8x384xf32>
    %23 = arith.truncf %17 : vector<8x128xf32> to vector<8x128xbf16>
    %cst_20 = arith.constant dense<0.000000e+00> : vector<8x384xf32>
    %24 = tpu.matmul %23, %13, %cst_20 {dimension_numbers = #tpu.dot_dimension_numbers<[1], [0], [0], [1], [0, 0, 1, 1], [], []>} : vector<8x128xbf16>, vector<128x384xbf16>, vector<8x384xf32> -> vector<8x384xf32>
    %25 = vector.extract_strided_slice %22 {offsets = [0, 0], sizes = [8, 128], strides = [1, 1]} : vector<8x384xf32> to vector<8x128xf32>
    %26 = vector.extract_strided_slice %24 {offsets = [0, 0], sizes = [8, 128], strides = [1, 1]} : vector<8x384xf32> to vector<8x128xf32>
    %27 = arith.addf %25, %26 : vector<8x128xf32>
    %28 = arith.negf %27 : vector<8x128xf32>
    %29 = math.exp %28 : vector<8x128xf32>
    %cst_21 = arith.constant 1.000000e+00 : f32
    %30 = vector.broadcast %cst_21 : f32 to vector<8x128xf32>
    %31 = arith.addf %30, %29 : vector<8x128xf32>
    %32 = arith.divf %30, %31 : vector<8x128xf32>
    %33 = vector.extract_strided_slice %22 {offsets = [0, 128], sizes = [8, 128], strides = [1, 1]} : vector<8x384xf32> to vector<8x128xf32>
    %34 = vector.extract_strided_slice %24 {offsets = [0, 128], sizes = [8, 128], strides = [1, 1]} : vector<8x384xf32> to vector<8x128xf32>
    %35 = arith.addf %33, %34 : vector<8x128xf32>
    %36 = arith.negf %35 : vector<8x128xf32>
    %37 = math.exp %36 : vector<8x128xf32>
    %cst_22 = arith.constant 1.000000e+00 : f32
    %38 = vector.broadcast %cst_22 : f32 to vector<8x128xf32>
    %39 = arith.addf %38, %37 : vector<8x128xf32>
    %40 = arith.divf %38, %39 : vector<8x128xf32>
    %41 = vector.extract_strided_slice %22 {offsets = [0, 256], sizes = [8, 128], strides = [1, 1]} : vector<8x384xf32> to vector<8x128xf32>
    %42 = vector.extract_strided_slice %24 {offsets = [0, 256], sizes = [8, 128], strides = [1, 1]} : vector<8x384xf32> to vector<8x128xf32>
    %43 = arith.addf %42, %16 : vector<8x128xf32>
    %44 = arith.mulf %32, %43 : vector<8x128xf32>
    %45 = arith.addf %41, %44 : vector<8x128xf32>
    %46 = math.tanh %45 : vector<8x128xf32>
    %cst_23 = arith.constant 1.000000e+00 : f32
    %47 = vector.broadcast %cst_23 : f32 to vector<8x128xf32>
    %48 = arith.subf %47, %40 : vector<8x128xf32>
    %49 = arith.mulf %48, %46 : vector<8x128xf32>
    %50 = arith.mulf %40, %17 : vector<8x128xf32>
    %51 = arith.addf %49, %50 : vector<8x128xf32>
    %52 = arith.index_cast %19 : i32 to index
    %c0_24 = arith.constant 0 : index
    %c0_25 = arith.constant 0 : index
    %53 = vector.load %arg7[%52, %c0_24, %c0_25] : memref<8x8x128xf32, #tpu.memory_space<vmem>>, vector<1x8x128xf32>
    %54 = vector.shape_cast %53 : vector<1x8x128xf32> to vector<8x128xf32>
    %55 = vector.shape_cast %51 : vector<8x128xf32> to vector<1x8x128xf32>
    tpu.vector_store %arg7[%52, %c0_24, %c0_25], %55 {strides = array<i32>} : memref<8x8x128xf32, #tpu.memory_space<vmem>>, vector<1x8x128xf32>,
    %c1_i32 = arith.constant 1 : i32
    %56 = arith.addi %18, %c1_i32 : i32
    %57 = arith.index_cast %56 : i32 to index
    %c0_26 = arith.constant 0 : index
    %c0_27 = arith.constant 0 : index
    %58 = vector.load %arg9[%57, %c0_26, %c0_27] : memref<8x8x384xf32, #tpu.memory_space<vmem>>, vector<1x8x384xf32>
    %59 = vector.shape_cast %58 : vector<1x8x384xf32> to vector<8x384xf32>
    %60 = arith.truncf %51 : vector<8x128xf32> to vector<8x128xbf16>
    %cst_28 = arith.constant dense<0.000000e+00> : vector<8x384xf32>
    %61 = tpu.matmul %60, %13, %cst_28 {dimension_numbers = #tpu.dot_dimension_numbers<[1], [0], [0], [1], [0, 0, 1, 1], [], []>} : vector<8x128xbf16>, vector<128x384xbf16>, vector<8x384xf32> -> vector<8x384xf32>
    %62 = vector.extract_strided_slice %59 {offsets = [0, 0], sizes = [8, 128], strides = [1, 1]} : vector<8x384xf32> to vector<8x128xf32>
    %63 = vector.extract_strided_slice %61 {offsets = [0, 0], sizes = [8, 128], strides = [1, 1]} : vector<8x384xf32> to vector<8x128xf32>
    %64 = arith.addf %62, %63 : vector<8x128xf32>
    %65 = arith.negf %64 : vector<8x128xf32>
    %66 = math.exp %65 : vector<8x128xf32>
    %cst_29 = arith.constant 1.000000e+00 : f32
    %67 = vector.broadcast %cst_29 : f32 to vector<8x128xf32>
    %68 = arith.addf %67, %66 : vector<8x128xf32>
    %69 = arith.divf %67, %68 : vector<8x128xf32>
    %70 = vector.extract_strided_slice %59 {offsets = [0, 128], sizes = [8, 128], strides = [1, 1]} : vector<8x384xf32> to vector<8x128xf32>
    %71 = vector.extract_strided_slice %61 {offsets = [0, 128], sizes = [8, 128], strides = [1, 1]} : vector<8x384xf32> to vector<8x128xf32>
    %72 = arith.addf %70, %71 : vector<8x128xf32>
    %73 = arith.negf %72 : vector<8x128xf32>
    %74 = math.exp %73 : vector<8x128xf32>
    %cst_30 = arith.constant 1.000000e+00 : f32
    %75 = vector.broadcast %cst_30 : f32 to vector<8x128xf32>
    %76 = arith.addf %75, %74 : vector<8x128xf32>
    %77 = arith.divf %75, %76 : vector<8x128xf32>
    %78 = vector.extract_strided_slice %59 {offsets = [0, 256], sizes = [8, 128], strides = [1, 1]} : vector<8x384xf32> to vector<8x128xf32>
    %79 = vector.extract_strided_slice %61 {offsets = [0, 256], sizes = [8, 128], strides = [1, 1]} : vector<8x384xf32> to vector<8x128xf32>
    %80 = arith.addf %79, %16 : vector<8x128xf32>
    %81 = arith.mulf %69, %80 : vector<8x128xf32>
    %82 = arith.addf %78, %81 : vector<8x128xf32>
    %83 = math.tanh %82 : vector<8x128xf32>
    %cst_31 = arith.constant 1.000000e+00 : f32
    %84 = vector.broadcast %cst_31 : f32 to vector<8x128xf32>
    %85 = arith.subf %84, %77 : vector<8x128xf32>
    %86 = arith.mulf %85, %83 : vector<8x128xf32>
    %87 = arith.mulf %77, %51 : vector<8x128xf32>
    %88 = arith.addf %86, %87 : vector<8x128xf32>
    %89 = arith.index_cast %56 : i32 to index
    %c0_32 = arith.constant 0 : index
    %c0_33 = arith.constant 0 : index
    %90 = vector.load %arg7[%89, %c0_32, %c0_33] : memref<8x8x128xf32, #tpu.memory_space<vmem>>, vector<1x8x128xf32>
    %91 = vector.shape_cast %90 : vector<1x8x128xf32> to vector<8x128xf32>
    %92 = vector.shape_cast %88 : vector<8x128xf32> to vector<1x8x128xf32>
    tpu.vector_store %arg7[%89, %c0_32, %c0_33], %92 {strides = array<i32>} : memref<8x8x128xf32, #tpu.memory_space<vmem>>, vector<1x8x128xf32>,
    %c2_i32 = arith.constant 2 : i32
    %93 = arith.addi %18, %c2_i32 : i32
    %94 = arith.index_cast %93 : i32 to index
    %c0_34 = arith.constant 0 : index
    %c0_35 = arith.constant 0 : index
    %95 = vector.load %arg9[%94, %c0_34, %c0_35] : memref<8x8x384xf32, #tpu.memory_space<vmem>>, vector<1x8x384xf32>
    %96 = vector.shape_cast %95 : vector<1x8x384xf32> to vector<8x384xf32>
    %97 = arith.truncf %88 : vector<8x128xf32> to vector<8x128xbf16>
    %cst_36 = arith.constant dense<0.000000e+00> : vector<8x384xf32>
    %98 = tpu.matmul %97, %13, %cst_36 {dimension_numbers = #tpu.dot_dimension_numbers<[1], [0], [0], [1], [0, 0, 1, 1], [], []>} : vector<8x128xbf16>, vector<128x384xbf16>, vector<8x384xf32> -> vector<8x384xf32>
    %99 = vector.extract_strided_slice %96 {offsets = [0, 0], sizes = [8, 128], strides = [1, 1]} : vector<8x384xf32> to vector<8x128xf32>
    %100 = vector.extract_strided_slice %98 {offsets = [0, 0], sizes = [8, 128], strides = [1, 1]} : vector<8x384xf32> to vector<8x128xf32>
    %101 = arith.addf %99, %100 : vector<8x128xf32>
    %102 = arith.negf %101 : vector<8x128xf32>
    %103 = math.exp %102 : vector<8x128xf32>
    %cst_37 = arith.constant 1.000000e+00 : f32
    %104 = vector.broadcast %cst_37 : f32 to vector<8x128xf32>
    %105 = arith.addf %104, %103 : vector<8x128xf32>
    %106 = arith.divf %104, %105 : vector<8x128xf32>
    %107 = vector.extract_strided_slice %96 {offsets = [0, 128], sizes = [8, 128], strides = [1, 1]} : vector<8x384xf32> to vector<8x128xf32>
    %108 = vector.extract_strided_slice %98 {offsets = [0, 128], sizes = [8, 128], strides = [1, 1]} : vector<8x384xf32> to vector<8x128xf32>
    %109 = arith.addf %107, %108 : vector<8x128xf32>
    %110 = arith.negf %109 : vector<8x128xf32>
    %111 = math.exp %110 : vector<8x128xf32>
    %cst_38 = arith.constant 1.000000e+00 : f32
    %112 = vector.broadcast %cst_38 : f32 to vector<8x128xf32>
    %113 = arith.addf %112, %111 : vector<8x128xf32>
    %114 = arith.divf %112, %113 : vector<8x128xf32>
    %115 = vector.extract_strided_slice %96 {offsets = [0, 256], sizes = [8, 128], strides = [1, 1]} : vector<8x384xf32> to vector<8x128xf32>
    %116 = vector.extract_strided_slice %98 {offsets = [0, 256], sizes = [8, 128], strides = [1, 1]} : vector<8x384xf32> to vector<8x128xf32>
    %117 = arith.addf %116, %16 : vector<8x128xf32>
    %118 = arith.mulf %106, %117 : vector<8x128xf32>
    %119 = arith.addf %115, %118 : vector<8x128xf32>
    %120 = math.tanh %119 : vector<8x128xf32>
    %cst_39 = arith.constant 1.000000e+00 : f32
    %121 = vector.broadcast %cst_39 : f32 to vector<8x128xf32>
    %122 = arith.subf %121, %114 : vector<8x128xf32>
    %123 = arith.mulf %122, %120 : vector<8x128xf32>
    %124 = arith.mulf %114, %88 : vector<8x128xf32>
    %125 = arith.addf %123, %124 : vector<8x128xf32>
    %126 = arith.index_cast %93 : i32 to index
    %c0_40 = arith.constant 0 : index
    %c0_41 = arith.constant 0 : index
    %127 = vector.load %arg7[%126, %c0_40, %c0_41] : memref<8x8x128xf32, #tpu.memory_space<vmem>>, vector<1x8x128xf32>
    %128 = vector.shape_cast %127 : vector<1x8x128xf32> to vector<8x128xf32>
    %129 = vector.shape_cast %125 : vector<8x128xf32> to vector<1x8x128xf32>
    tpu.vector_store %arg7[%126, %c0_40, %c0_41], %129 {strides = array<i32>} : memref<8x8x128xf32, #tpu.memory_space<vmem>>, vector<1x8x128xf32>,
    %c3_i32 = arith.constant 3 : i32
    %130 = arith.addi %18, %c3_i32 : i32
    %131 = arith.index_cast %130 : i32 to index
    %c0_42 = arith.constant 0 : index
    %c0_43 = arith.constant 0 : index
    %132 = vector.load %arg9[%131, %c0_42, %c0_43] : memref<8x8x384xf32, #tpu.memory_space<vmem>>, vector<1x8x384xf32>
    %133 = vector.shape_cast %132 : vector<1x8x384xf32> to vector<8x384xf32>
    %134 = arith.truncf %125 : vector<8x128xf32> to vector<8x128xbf16>
    %cst_44 = arith.constant dense<0.000000e+00> : vector<8x384xf32>
    %135 = tpu.matmul %134, %13, %cst_44 {dimension_numbers = #tpu.dot_dimension_numbers<[1], [0], [0], [1], [0, 0, 1, 1], [], []>} : vector<8x128xbf16>, vector<128x384xbf16>, vector<8x384xf32> -> vector<8x384xf32>
    %136 = vector.extract_strided_slice %133 {offsets = [0, 0], sizes = [8, 128], strides = [1, 1]} : vector<8x384xf32> to vector<8x128xf32>
    %137 = vector.extract_strided_slice %135 {offsets = [0, 0], sizes = [8, 128], strides = [1, 1]} : vector<8x384xf32> to vector<8x128xf32>
    %138 = arith.addf %136, %137 : vector<8x128xf32>
    %139 = arith.negf %138 : vector<8x128xf32>
    %140 = math.exp %139 : vector<8x128xf32>
    %cst_45 = arith.constant 1.000000e+00 : f32
    %141 = vector.broadcast %cst_45 : f32 to vector<8x128xf32>
    %142 = arith.addf %141, %140 : vector<8x128xf32>
    %143 = arith.divf %141, %142 : vector<8x128xf32>
    %144 = vector.extract_strided_slice %133 {offsets = [0, 128], sizes = [8, 128], strides = [1, 1]} : vector<8x384xf32> to vector<8x128xf32>
    %145 = vector.extract_strided_slice %135 {offsets = [0, 128], sizes = [8, 128], strides = [1, 1]} : vector<8x384xf32> to vector<8x128xf32>
    %146 = arith.addf %144, %145 : vector<8x128xf32>
    %147 = arith.negf %146 : vector<8x128xf32>
    %148 = math.exp %147 : vector<8x128xf32>
    %cst_46 = arith.constant 1.000000e+00 : f32
    %149 = vector.broadcast %cst_46 : f32 to vector<8x128xf32>
    %150 = arith.addf %149, %148 : vector<8x128xf32>
    %151 = arith.divf %149, %150 : vector<8x128xf32>
    %152 = vector.extract_strided_slice %133 {offsets = [0, 256], sizes = [8, 128], strides = [1, 1]} : vector<8x384xf32> to vector<8x128xf32>
    %153 = vector.extract_strided_slice %135 {offsets = [0, 256], sizes = [8, 128], strides = [1, 1]} : vector<8x384xf32> to vector<8x128xf32>
    %154 = arith.addf %153, %16 : vector<8x128xf32>
    %155 = arith.mulf %143, %154 : vector<8x128xf32>
    %156 = arith.addf %152, %155 : vector<8x128xf32>
    %157 = math.tanh %156 : vector<8x128xf32>
    %cst_47 = arith.constant 1.000000e+00 : f32
    %158 = vector.broadcast %cst_47 : f32 to vector<8x128xf32>
    %159 = arith.subf %158, %151 : vector<8x128xf32>
    %160 = arith.mulf %159, %157 : vector<8x128xf32>
    %161 = arith.mulf %151, %125 : vector<8x128xf32>
    %162 = arith.addf %160, %161 : vector<8x128xf32>
    %163 = arith.index_cast %130 : i32 to index
    %c0_48 = arith.constant 0 : index
    %c0_49 = arith.constant 0 : index
    %164 = vector.load %arg7[%163, %c0_48, %c0_49] : memref<8x8x128xf32, #tpu.memory_space<vmem>>, vector<1x8x128xf32>
    %165 = vector.shape_cast %164 : vector<1x8x128xf32> to vector<8x128xf32>
    %166 = vector.shape_cast %162 : vector<8x128xf32> to vector<1x8x128xf32>
    tpu.vector_store %arg7[%163, %c0_48, %c0_49], %166 {strides = array<i32>} : memref<8x8x128xf32, #tpu.memory_space<vmem>>, vector<1x8x128xf32>,
    %c4_i32 = arith.constant 4 : i32
    %167 = arith.addi %18, %c4_i32 : i32
    %168 = arith.index_cast %167 : i32 to index
    %c0_50 = arith.constant 0 : index
    %c0_51 = arith.constant 0 : index
    %169 = vector.load %arg9[%168, %c0_50, %c0_51] : memref<8x8x384xf32, #tpu.memory_space<vmem>>, vector<1x8x384xf32>
    %170 = vector.shape_cast %169 : vector<1x8x384xf32> to vector<8x384xf32>
    %171 = arith.truncf %162 : vector<8x128xf32> to vector<8x128xbf16>
    %cst_52 = arith.constant dense<0.000000e+00> : vector<8x384xf32>
    %172 = tpu.matmul %171, %13, %cst_52 {dimension_numbers = #tpu.dot_dimension_numbers<[1], [0], [0], [1], [0, 0, 1, 1], [], []>} : vector<8x128xbf16>, vector<128x384xbf16>, vector<8x384xf32> -> vector<8x384xf32>
    %173 = vector.extract_strided_slice %170 {offsets = [0, 0], sizes = [8, 128], strides = [1, 1]} : vector<8x384xf32> to vector<8x128xf32>
    %174 = vector.extract_strided_slice %172 {offsets = [0, 0], sizes = [8, 128], strides = [1, 1]} : vector<8x384xf32> to vector<8x128xf32>
    %175 = arith.addf %173, %174 : vector<8x128xf32>
    %176 = arith.negf %175 : vector<8x128xf32>
    %177 = math.exp %176 : vector<8x128xf32>
    %cst_53 = arith.constant 1.000000e+00 : f32
    %178 = vector.broadcast %cst_53 : f32 to vector<8x128xf32>
    %179 = arith.addf %178, %177 : vector<8x128xf32>
    %180 = arith.divf %178, %179 : vector<8x128xf32>
    %181 = vector.extract_strided_slice %170 {offsets = [0, 128], sizes = [8, 128], strides = [1, 1]} : vector<8x384xf32> to vector<8x128xf32>
    %182 = vector.extract_strided_slice %172 {offsets = [0, 128], sizes = [8, 128], strides = [1, 1]} : vector<8x384xf32> to vector<8x128xf32>
    %183 = arith.addf %181, %182 : vector<8x128xf32>
    %184 = arith.negf %183 : vector<8x128xf32>
    %185 = math.exp %184 : vector<8x128xf32>
    %cst_54 = arith.constant 1.000000e+00 : f32
    %186 = vector.broadcast %cst_54 : f32 to vector<8x128xf32>
    %187 = arith.addf %186, %185 : vector<8x128xf32>
    %188 = arith.divf %186, %187 : vector<8x128xf32>
    %189 = vector.extract_strided_slice %170 {offsets = [0, 256], sizes = [8, 128], strides = [1, 1]} : vector<8x384xf32> to vector<8x128xf32>
    %190 = vector.extract_strided_slice %172 {offsets = [0, 256], sizes = [8, 128], strides = [1, 1]} : vector<8x384xf32> to vector<8x128xf32>
    %191 = arith.addf %190, %16 : vector<8x128xf32>
    %192 = arith.mulf %180, %191 : vector<8x128xf32>
    %193 = arith.addf %189, %192 : vector<8x128xf32>
    %194 = math.tanh %193 : vector<8x128xf32>
    %cst_55 = arith.constant 1.000000e+00 : f32
    %195 = vector.broadcast %cst_55 : f32 to vector<8x128xf32>
    %196 = arith.subf %195, %188 : vector<8x128xf32>
    %197 = arith.mulf %196, %194 : vector<8x128xf32>
    %198 = arith.mulf %188, %162 : vector<8x128xf32>
    %199 = arith.addf %197, %198 : vector<8x128xf32>
    %200 = arith.index_cast %167 : i32 to index
    %c0_56 = arith.constant 0 : index
    %c0_57 = arith.constant 0 : index
    %201 = vector.load %arg7[%200, %c0_56, %c0_57] : memref<8x8x128xf32, #tpu.memory_space<vmem>>, vector<1x8x128xf32>
    %202 = vector.shape_cast %201 : vector<1x8x128xf32> to vector<8x128xf32>
    %203 = vector.shape_cast %199 : vector<8x128xf32> to vector<1x8x128xf32>
    tpu.vector_store %arg7[%200, %c0_56, %c0_57], %203 {strides = array<i32>} : memref<8x8x128xf32, #tpu.memory_space<vmem>>, vector<1x8x128xf32>,
    %c5_i32 = arith.constant 5 : i32
    %204 = arith.addi %18, %c5_i32 : i32
    %205 = arith.index_cast %204 : i32 to index
    %c0_58 = arith.constant 0 : index
    %c0_59 = arith.constant 0 : index
    %206 = vector.load %arg9[%205, %c0_58, %c0_59] : memref<8x8x384xf32, #tpu.memory_space<vmem>>, vector<1x8x384xf32>
    %207 = vector.shape_cast %206 : vector<1x8x384xf32> to vector<8x384xf32>
    %208 = arith.truncf %199 : vector<8x128xf32> to vector<8x128xbf16>
    %cst_60 = arith.constant dense<0.000000e+00> : vector<8x384xf32>
    %209 = tpu.matmul %208, %13, %cst_60 {dimension_numbers = #tpu.dot_dimension_numbers<[1], [0], [0], [1], [0, 0, 1, 1], [], []>} : vector<8x128xbf16>, vector<128x384xbf16>, vector<8x384xf32> -> vector<8x384xf32>
    %210 = vector.extract_strided_slice %207 {offsets = [0, 0], sizes = [8, 128], strides = [1, 1]} : vector<8x384xf32> to vector<8x128xf32>
    %211 = vector.extract_strided_slice %209 {offsets = [0, 0], sizes = [8, 128], strides = [1, 1]} : vector<8x384xf32> to vector<8x128xf32>
    %212 = arith.addf %210, %211 : vector<8x128xf32>
    %213 = arith.negf %212 : vector<8x128xf32>
    %214 = math.exp %213 : vector<8x128xf32>
    %cst_61 = arith.constant 1.000000e+00 : f32
    %215 = vector.broadcast %cst_61 : f32 to vector<8x128xf32>
    %216 = arith.addf %215, %214 : vector<8x128xf32>
    %217 = arith.divf %215, %216 : vector<8x128xf32>
    %218 = vector.extract_strided_slice %207 {offsets = [0, 128], sizes = [8, 128], strides = [1, 1]} : vector<8x384xf32> to vector<8x128xf32>
    %219 = vector.extract_strided_slice %209 {offsets = [0, 128], sizes = [8, 128], strides = [1, 1]} : vector<8x384xf32> to vector<8x128xf32>
    %220 = arith.addf %218, %219 : vector<8x128xf32>
    %221 = arith.negf %220 : vector<8x128xf32>
    %222 = math.exp %221 : vector<8x128xf32>
    %cst_62 = arith.constant 1.000000e+00 : f32
    %223 = vector.broadcast %cst_62 : f32 to vector<8x128xf32>
    %224 = arith.addf %223, %222 : vector<8x128xf32>
    %225 = arith.divf %223, %224 : vector<8x128xf32>
    %226 = vector.extract_strided_slice %207 {offsets = [0, 256], sizes = [8, 128], strides = [1, 1]} : vector<8x384xf32> to vector<8x128xf32>
    %227 = vector.extract_strided_slice %209 {offsets = [0, 256], sizes = [8, 128], strides = [1, 1]} : vector<8x384xf32> to vector<8x128xf32>
    %228 = arith.addf %227, %16 : vector<8x128xf32>
    %229 = arith.mulf %217, %228 : vector<8x128xf32>
    %230 = arith.addf %226, %229 : vector<8x128xf32>
    %231 = math.tanh %230 : vector<8x128xf32>
    %cst_63 = arith.constant 1.000000e+00 : f32
    %232 = vector.broadcast %cst_63 : f32 to vector<8x128xf32>
    %233 = arith.subf %232, %225 : vector<8x128xf32>
    %234 = arith.mulf %233, %231 : vector<8x128xf32>
    %235 = arith.mulf %225, %199 : vector<8x128xf32>
    %236 = arith.addf %234, %235 : vector<8x128xf32>
    %237 = arith.index_cast %204 : i32 to index
    %c0_64 = arith.constant 0 : index
    %c0_65 = arith.constant 0 : index
    %238 = vector.load %arg7[%237, %c0_64, %c0_65] : memref<8x8x128xf32, #tpu.memory_space<vmem>>, vector<1x8x128xf32>
    %239 = vector.shape_cast %238 : vector<1x8x128xf32> to vector<8x128xf32>
    %240 = vector.shape_cast %236 : vector<8x128xf32> to vector<1x8x128xf32>
    tpu.vector_store %arg7[%237, %c0_64, %c0_65], %240 {strides = array<i32>} : memref<8x8x128xf32, #tpu.memory_space<vmem>>, vector<1x8x128xf32>,
    %c6_i32 = arith.constant 6 : i32
    %241 = arith.addi %18, %c6_i32 : i32
    %242 = arith.index_cast %241 : i32 to index
    %c0_66 = arith.constant 0 : index
    %c0_67 = arith.constant 0 : index
    %243 = vector.load %arg9[%242, %c0_66, %c0_67] : memref<8x8x384xf32, #tpu.memory_space<vmem>>, vector<1x8x384xf32>
    %244 = vector.shape_cast %243 : vector<1x8x384xf32> to vector<8x384xf32>
    %245 = arith.truncf %236 : vector<8x128xf32> to vector<8x128xbf16>
    %cst_68 = arith.constant dense<0.000000e+00> : vector<8x384xf32>
    %246 = tpu.matmul %245, %13, %cst_68 {dimension_numbers = #tpu.dot_dimension_numbers<[1], [0], [0], [1], [0, 0, 1, 1], [], []>} : vector<8x128xbf16>, vector<128x384xbf16>, vector<8x384xf32> -> vector<8x384xf32>
    %247 = vector.extract_strided_slice %244 {offsets = [0, 0], sizes = [8, 128], strides = [1, 1]} : vector<8x384xf32> to vector<8x128xf32>
    %248 = vector.extract_strided_slice %246 {offsets = [0, 0], sizes = [8, 128], strides = [1, 1]} : vector<8x384xf32> to vector<8x128xf32>
    %249 = arith.addf %247, %248 : vector<8x128xf32>
    %250 = arith.negf %249 : vector<8x128xf32>
    %251 = math.exp %250 : vector<8x128xf32>
    %cst_69 = arith.constant 1.000000e+00 : f32
    %252 = vector.broadcast %cst_69 : f32 to vector<8x128xf32>
    %253 = arith.addf %252, %251 : vector<8x128xf32>
    %254 = arith.divf %252, %253 : vector<8x128xf32>
    %255 = vector.extract_strided_slice %244 {offsets = [0, 128], sizes = [8, 128], strides = [1, 1]} : vector<8x384xf32> to vector<8x128xf32>
    %256 = vector.extract_strided_slice %246 {offsets = [0, 128], sizes = [8, 128], strides = [1, 1]} : vector<8x384xf32> to vector<8x128xf32>
    %257 = arith.addf %255, %256 : vector<8x128xf32>
    %258 = arith.negf %257 : vector<8x128xf32>
    %259 = math.exp %258 : vector<8x128xf32>
    %cst_70 = arith.constant 1.000000e+00 : f32
    %260 = vector.broadcast %cst_70 : f32 to vector<8x128xf32>
    %261 = arith.addf %260, %259 : vector<8x128xf32>
    %262 = arith.divf %260, %261 : vector<8x128xf32>
    %263 = vector.extract_strided_slice %244 {offsets = [0, 256], sizes = [8, 128], strides = [1, 1]} : vector<8x384xf32> to vector<8x128xf32>
    %264 = vector.extract_strided_slice %246 {offsets = [0, 256], sizes = [8, 128], strides = [1, 1]} : vector<8x384xf32> to vector<8x128xf32>
    %265 = arith.addf %264, %16 : vector<8x128xf32>
    %266 = arith.mulf %254, %265 : vector<8x128xf32>
    %267 = arith.addf %263, %266 : vector<8x128xf32>
    %268 = math.tanh %267 : vector<8x128xf32>
    %cst_71 = arith.constant 1.000000e+00 : f32
    %269 = vector.broadcast %cst_71 : f32 to vector<8x128xf32>
    %270 = arith.subf %269, %262 : vector<8x128xf32>
    %271 = arith.mulf %270, %268 : vector<8x128xf32>
    %272 = arith.mulf %262, %236 : vector<8x128xf32>
    %273 = arith.addf %271, %272 : vector<8x128xf32>
    %274 = arith.index_cast %241 : i32 to index
    %c0_72 = arith.constant 0 : index
    %c0_73 = arith.constant 0 : index
    %275 = vector.load %arg7[%274, %c0_72, %c0_73] : memref<8x8x128xf32, #tpu.memory_space<vmem>>, vector<1x8x128xf32>
    %276 = vector.shape_cast %275 : vector<1x8x128xf32> to vector<8x128xf32>
    %277 = vector.shape_cast %273 : vector<8x128xf32> to vector<1x8x128xf32>
    tpu.vector_store %arg7[%274, %c0_72, %c0_73], %277 {strides = array<i32>} : memref<8x8x128xf32, #tpu.memory_space<vmem>>, vector<1x8x128xf32>,
    %c7_i32 = arith.constant 7 : i32
    %278 = arith.addi %18, %c7_i32 : i32
    %279 = arith.index_cast %278 : i32 to index
    %c0_74 = arith.constant 0 : index
    %c0_75 = arith.constant 0 : index
    %280 = vector.load %arg9[%279, %c0_74, %c0_75] : memref<8x8x384xf32, #tpu.memory_space<vmem>>, vector<1x8x384xf32>
    %281 = vector.shape_cast %280 : vector<1x8x384xf32> to vector<8x384xf32>
    %282 = arith.truncf %273 : vector<8x128xf32> to vector<8x128xbf16>
    %cst_76 = arith.constant dense<0.000000e+00> : vector<8x384xf32>
    %283 = tpu.matmul %282, %13, %cst_76 {dimension_numbers = #tpu.dot_dimension_numbers<[1], [0], [0], [1], [0, 0, 1, 1], [], []>} : vector<8x128xbf16>, vector<128x384xbf16>, vector<8x384xf32> -> vector<8x384xf32>
    %284 = vector.extract_strided_slice %281 {offsets = [0, 0], sizes = [8, 128], strides = [1, 1]} : vector<8x384xf32> to vector<8x128xf32>
    %285 = vector.extract_strided_slice %283 {offsets = [0, 0], sizes = [8, 128], strides = [1, 1]} : vector<8x384xf32> to vector<8x128xf32>
    %286 = arith.addf %284, %285 : vector<8x128xf32>
    %287 = arith.negf %286 : vector<8x128xf32>
    %288 = math.exp %287 : vector<8x128xf32>
    %cst_77 = arith.constant 1.000000e+00 : f32
    %289 = vector.broadcast %cst_77 : f32 to vector<8x128xf32>
    %290 = arith.addf %289, %288 : vector<8x128xf32>
    %291 = arith.divf %289, %290 : vector<8x128xf32>
    %292 = vector.extract_strided_slice %281 {offsets = [0, 128], sizes = [8, 128], strides = [1, 1]} : vector<8x384xf32> to vector<8x128xf32>
    %293 = vector.extract_strided_slice %283 {offsets = [0, 128], sizes = [8, 128], strides = [1, 1]} : vector<8x384xf32> to vector<8x128xf32>
    %294 = arith.addf %292, %293 : vector<8x128xf32>
    %295 = arith.negf %294 : vector<8x128xf32>
    %296 = math.exp %295 : vector<8x128xf32>
    %cst_78 = arith.constant 1.000000e+00 : f32
    %297 = vector.broadcast %cst_78 : f32 to vector<8x128xf32>
    %298 = arith.addf %297, %296 : vector<8x128xf32>
    %299 = arith.divf %297, %298 : vector<8x128xf32>
    %300 = vector.extract_strided_slice %281 {offsets = [0, 256], sizes = [8, 128], strides = [1, 1]} : vector<8x384xf32> to vector<8x128xf32>
    %301 = vector.extract_strided_slice %283 {offsets = [0, 256], sizes = [8, 128], strides = [1, 1]} : vector<8x384xf32> to vector<8x128xf32>
    %302 = arith.addf %301, %16 : vector<8x128xf32>
    %303 = arith.mulf %291, %302 : vector<8x128xf32>
    %304 = arith.addf %300, %303 : vector<8x128xf32>
    %305 = math.tanh %304 : vector<8x128xf32>
    %cst_79 = arith.constant 1.000000e+00 : f32
    %306 = vector.broadcast %cst_79 : f32 to vector<8x128xf32>
    %307 = arith.subf %306, %299 : vector<8x128xf32>
    %308 = arith.mulf %307, %305 : vector<8x128xf32>
    %309 = arith.mulf %299, %273 : vector<8x128xf32>
    %310 = arith.addf %308, %309 : vector<8x128xf32>
    %311 = arith.index_cast %278 : i32 to index
    %c0_80 = arith.constant 0 : index
    %c0_81 = arith.constant 0 : index
    %312 = vector.load %arg7[%311, %c0_80, %c0_81] : memref<8x8x128xf32, #tpu.memory_space<vmem>>, vector<1x8x128xf32>
    %313 = vector.shape_cast %312 : vector<1x8x128xf32> to vector<8x128xf32>
    %314 = vector.shape_cast %310 : vector<8x128xf32> to vector<1x8x128xf32>
    tpu.vector_store %arg7[%311, %c0_80, %c0_81], %314 {strides = array<i32>} : memref<8x8x128xf32, #tpu.memory_space<vmem>>, vector<1x8x128xf32>,
    %c1_i32_82 = arith.constant 1 : i32
    %c0_83 = arith.constant 0 : index
    %c0_84 = arith.constant 0 : index
    %315 = vector.load %arg8[%c0_83, %c0_84] : memref<8x128xf32, #tpu.memory_space<vmem>>, vector<8x128xf32>
    tpu.vector_store %arg8[%c0_83, %c0_84], %310 {strides = array<i32>} : memref<8x128xf32, #tpu.memory_space<vmem>>, vector<8x128xf32>,
    return
  }
  func.func @transform_0(%arg0: i32, %arg1: i32) -> (i32, i32, i32) {
    %c0_i32 = arith.constant 0 : i32
    %c0_i32_0 = arith.constant 0 : i32
    return %arg1, %arg0, %c0_i32 : i32, i32, i32
  }
  func.func @transform_1(%arg0: i32, %arg1: i32) -> (i32, i32) {
    %c0_i32 = arith.constant 0 : i32
    %c0_i32_0 = arith.constant 0 : i32
    %c0_i32_1 = arith.constant 0 : i32
    return %c0_i32, %c0_i32_0 : i32, i32
  }
  func.func @transform_2(%arg0: i32, %arg1: i32) -> (i32, i32) {
    %c0_i32 = arith.constant 0 : i32
    %c0_i32_0 = arith.constant 0 : i32
    %c0_i32_1 = arith.constant 0 : i32
    return %c0_i32, %c0_i32_0 : i32, i32
  }
  func.func @transform_3(%arg0: i32, %arg1: i32) -> (i32, i32) {
    %c0_i32 = arith.constant 0 : i32
    %c0_i32_0 = arith.constant 0 : i32
    %c0_i32_1 = arith.constant 0 : i32
    return %c0_i32, %c0_i32_0 : i32, i32
  }
  func.func @transform_4(%arg0: i32, %arg1: i32) -> (i32, i32) {
    %c0_i32 = arith.constant 0 : i32
    %c0_i32_0 = arith.constant 0 : i32
    %c0_i32_1 = arith.constant 0 : i32
    return %c0_i32, %c0_i32_0 : i32, i32
  }
  func.func @transform_5(%arg0: i32, %arg1: i32) -> (i32, i32, i32) {
    %c0_i32 = arith.constant 0 : i32
    %c0_i32_0 = arith.constant 0 : i32
    return %arg1, %arg0, %c0_i32 : i32, i32, i32
  }
}

</mosaic_0001>

<llo_original>
// kernel: tpu_custom_call.1
$region0: #{tpu_custom_call.1}
  #allocation0 [shape = 'u32[]', space=smem, size = 0x4, offset = 0x4, fixed_abs, tag = 'smem constant byte address 0x4 - core index']
  #allocation1 [shape = 'u32[144,128]{1,0:T(1,128)}', space=vmem, size = 0x12000, scoped, tag = 'internal scratch']
  #allocation2 [shape = 'f32[8,128]{1,0:T(8,128)}', space=vmem, size = 0x1000, scoped, tag = 'scratch operand']
  #allocation3 [shape = 'f32[8,8,384]{2,1,0:T(8,128)}', space=vmem, size = 0x18000, scoped, tag = 'scratch operand']
  %s0 = inlined_call_operand.hbm [shape: f32[8,8,128], index: 0, kind: input, shape index: {}]
  %s1 = inlined_call_operand.hbm [shape: bf16[128,384], index: 1, kind: input, shape index: {}]
  %s2 = inlined_call_operand.hbm [shape: bf16[128,384], index: 2, kind: input, shape index: {}]
  %s3 = inlined_call_operand.vmem [shape: f32[1,384], index: 3, kind: input, shape index: {}]
  %s4 = inlined_call_operand.vmem [shape: f32[1,128], index: 4, kind: input, shape index: {}]
  %s5 = inlined_call_operand.hbm [shape: f32[8,8,128], index: 5, kind: output, shape index: {}]
  %s6 = sld [smem:[#allocation0]]
  $region46: #{tpu_custom_call.1} parent=0
    _
  %s8 = ssub.s32 1, %s6
  %s9 = scalar_select 0, %s8, %s6
  $region1: #{tpu_custom_call.1} parent=0
    #allocation4 [shape = 'u8[32768]{0}', space=vmem, size = 0x8000, scoped, tag = 'input window, operand 0, single buffered']
    #allocation5 [shape = 's32[1]{0}', space=sflag, size = 0x4, scoped, tag = 'scoped memory for tpu_custom_call.1']
    #allocation6 [shape = 's32[1]{0}', space=sflag, size = 0x4, scoped, tag = 'scoped memory for tpu_custom_call.1']
    #allocation7 [shape = 'u8[98304]{0}', space=vmem, size = 0x18000, scoped, tag = 'input window, operand 1, single buffered']
    #allocation8 [shape = 's32[1]{0}', space=sflag, size = 0x4, scoped, tag = 'scoped memory for tpu_custom_call.1']
    #allocation9 [shape = 'u8[98304]{0}', space=vmem, size = 0x18000, scoped, tag = 'input window, operand 2, single buffered']
    #allocation10 [shape = 'u8[32768]{0}', space=vmem, size = 0x8000, scoped, tag = 'output window, operand 0, single buffered']
    %10 = vsyncpa [#allocation5], 0
    %11 = vsyncpa [#allocation8], 0
    %12 = vsyncpa [#allocation6], 0
    // Predicated region
    $region2: #{tpu_custom_call.1} parent=1 // pred_check
      _
    $region3: #{tpu_custom_call.1} parent=1 // pred_check_branch
      %14 = sbr.rel (0) target = $region5
    $region4: #{tpu_custom_call.1} parent=1 // pred_region
      %s16 = ssub.s32 1024, 1024
      %17 = vsyncadd [#allocation5], %s16
      %s18 = sshll.u32 [#allocation4], 4
      %s19 = int_to_ptr.vmem [resolvable:$true] %s18
      %24 = dma.hbm_to_vmem [thread:$0]  %s0, 1024, %s19, [#allocation5], 128, 128, 8
    $region5: #{tpu_custom_call.1} parent=1 // pred_fallthru
      _
    // Predicated region
    $region6: #{tpu_custom_call.1} parent=1 // pred_check
      _
    $region7: #{tpu_custom_call.1} parent=1 // pred_check_branch
      %26 = sbr.rel (0) target = $region9
    $region8: #{tpu_custom_call.1} parent=1 // pred_region
      %s28 = ssub.s32 3072, 3072
      %29 = vsyncadd [#allocation8], %s28
      %s30 = sshll.u32 [#allocation7], 4
      %s31 = int_to_ptr.vmem [resolvable:$true] %s30
      %36 = dma.hbm_to_vmem [thread:$0]  %s1, 3072, %s31, [#allocation8], 192, 192, 12
    $region9: #{tpu_custom_call.1} parent=1 // pred_fallthru
      _
    // Predicated region
    $region10: #{tpu_custom_call.1} parent=1 // pred_check
      _
    $region11: #{tpu_custom_call.1} parent=1 // pred_check_branch
      %38 = sbr.rel (0) target = $region13
    $region12: #{tpu_custom_call.1} parent=1 // pred_region
      %s40 = ssub.s32 3072, 3072
      %41 = vsyncadd [#allocation8], %s40
      %s42 = sshll.u32 [#allocation9], 4
      %s43 = int_to_ptr.vmem [resolvable:$true] %s42
      %48 = dma.hbm_to_vmem [thread:$0]  %s2, 3072, %s43, [#allocation8], 192, 192, 12
    $region13: #{tpu_custom_call.1} parent=1 // pred_fallthru
      _
    // Predicated region
    $region14: #{tpu_custom_call.1} parent=1 // pred_check
      _
    $region15: #{tpu_custom_call.1} parent=1 // pred_check_branch
      %50 = sbr.rel (0) target = $region17
    $region16: #{tpu_custom_call.1} parent=1 // pred_region
      _
    $region17: #{tpu_custom_call.1} parent=1 // pred_fallthru
      _
    // Predicated region
    $region18: #{tpu_custom_call.1} parent=1 // pred_check
      _
    $region19: #{tpu_custom_call.1} parent=1 // pred_check_branch
      %52 = sbr.rel (0) target = $region21
    $region20: #{tpu_custom_call.1} parent=1 // pred_region
      _
    $region21: #{tpu_custom_call.1} parent=1 // pred_fallthru
      _
    // Predicated region
    $region22: #{tpu_custom_call.1} parent=1 // pred_check
      _
    $region23: #{tpu_custom_call.1} parent=1 // pred_check_branch
      %54 = sbr.rel (0) target = $region25
    $region24: #{tpu_custom_call.1} parent=1 // pred_region
      %55 = dma.done [#allocation5], 1024
    $region25: #{tpu_custom_call.1} parent=1 // pred_fallthru
      _
    // Predicated region
    $region26: #{tpu_custom_call.1} parent=1 // pred_check
      _
    $region27: #{tpu_custom_call.1} parent=1 // pred_check_branch
      %57 = sbr.rel (0) target = $region29
    $region28: #{tpu_custom_call.1} parent=1 // pred_region
      %58 = dma.done [#allocation8], 3072
    $region29: #{tpu_custom_call.1} parent=1 // pred_fallthru
      _
    // Predicated region
    $region30: #{tpu_custom_call.1} parent=1 // pred_check
      _
    $region31: #{tpu_custom_call.1} parent=1 // pred_check_branch
      %60 = sbr.rel (0) target = $region33
    $region32: #{tpu_custom_call.1} parent=1 // pred_region
      %61 = dma.done [#allocation8], 3072
    $region33: #{tpu_custom_call.1} parent=1 // pred_fallthru
      _
    %p63 = scmp.eq.s32.totalorder 0, 0
    // Predicated region
    $region34: #{tpu_custom_call.1} parent=1 // pred_check
      %p64 = pneg %p63
    $region35: #{tpu_custom_call.1} parent=1 // pred_check_branch
      %66 = sbr.rel (%p64) target = $region37
    $region36: #{tpu_custom_call.1} parent=1 // pred_region
      %67 = vst [vmem:[#allocation2] sm:$0xff] 0.0
    $region37: #{tpu_custom_call.1} parent=1 // pred_fallthru
      _
    %v68 = vld [vmem:[#allocation4] sm:$0xff]
    %v69 = vld [vmem:[#allocation4 + $0x8] sm:$0xff]
    %v70 = vld [vmem:[#allocation4 + $0x10] sm:$0xff]
    %v71 = vld [vmem:[#allocation4 + $0x18] sm:$0xff]
    %v72 = vld [vmem:[#allocation4 + $0x20] sm:$0xff]
    %v73 = vld [vmem:[#allocation4 + $0x28] sm:$0xff]
    %v74 = vld [vmem:[#allocation4 + $0x30] sm:$0xff]
    %v75 = vld [vmem:[#allocation4 + $0x38] sm:$0xff]
    %v76 = vpack.c.bf16 %v69, %v68
    %v77 = vpack.c.bf16 %v71, %v70
    %v78 = vpack.c.bf16 %v73, %v72
    %v79 = vpack.c.bf16 %v75, %v74
    %v80 = vld [vmem:[#allocation7] sm:$0xff]
    %v81 = vld [vmem:[#allocation7 + $0x8] sm:$0xf]
    %v82 = vld [vmem:[#allocation7 + $0xc] sm:$0xff]
    %v83 = vld [vmem:[#allocation7 + $0x14] sm:$0xf]
    %v84 = vld [vmem:[#allocation7 + $0x18] sm:$0xff]
    %v85 = vld [vmem:[#allocation7 + $0x20] sm:$0xf]
    %v86 = vld [vmem:[#allocation7 + $0x24] sm:$0xff]
    %v87 = vld [vmem:[#allocation7 + $0x2c] sm:$0xf]
    %v88 = vld [vmem:[#allocation7 + $0x30] sm:$0xff]
    %v89 = vld [vmem:[#allocation7 + $0x38] sm:$0xf]
    %v90 = vld [vmem:[#allocation7 + $0x3c] sm:$0xff]
    %v91 = vld [vmem:[#allocation7 + $0x44] sm:$0xf]
    %v92 = vld [vmem:[#allocation7 + $0x48] sm:$0xff]
    %v93 = vld [vmem:[#allocation7 + $0x50] sm:$0xf]
    %v94 = vld [vmem:[#allocation7 + $0x54] sm:$0xff]
    %v95 = vld [vmem:[#allocation7 + $0x5c] sm:$0xf]
    %v96 = vld [vmem:[#allocation7 + $0x60] sm:$0xff]
    %v97 = vld [vmem:[#allocation7 + $0x68] sm:$0xf]
    %v98 = vld [vmem:[#allocation7 + $0x6c] sm:$0xff]
    %v99 = vld [vmem:[#allocation7 + $0x74] sm:$0xf]
    %v100 = vld [vmem:[#allocation7 + $0x78] sm:$0xff]
    %v101 = vld [vmem:[#allocation7 + $0x80] sm:$0xf]
    %v102 = vld [vmem:[#allocation7 + $0x84] sm:$0xff]
    %v103 = vld [vmem:[#allocation7 + $0x8c] sm:$0xf]
    %v104 = vld [vmem:[#allocation7 + $0x90] sm:$0xff]
    %v105 = vld [vmem:[#allocation7 + $0x98] sm:$0xf]
    %v106 = vld [vmem:[#allocation7 + $0x9c] sm:$0xff]
    %v107 = vld [vmem:[#allocation7 + $0xa4] sm:$0xf]
    %v108 = vld [vmem:[#allocation7 + $0xa8] sm:$0xff]
    %v109 = vld [vmem:[#allocation7 + $0xb0] sm:$0xf]
    %v110 = vld [vmem:[#allocation7 + $0xb4] sm:$0xff]
    %v111 = vld [vmem:[#allocation7 + $0xbc] sm:$0xf]
    %v112 = vld [vmem:[%s3] sm:$0x7]
    %v114 = vlaneseq
    %v115 = vshrl.u32 %v114, 7
    %v116 = vsub.s32 0, %v115
    %v117 = vrot.slane %v112, %v116
    %v118 = vlaneseq
    %v119 = vshrl.u32 %v118, 7
    %v120 = vsub.s32 1, %v119
    %v121 = vrot.slane %v112, %v120
    %v122 = vlaneseq
    %v123 = vshrl.u32 %v122, 7
    %v124 = vsub.s32 2, %v123
    %v125 = vrot.slane %v112, %v124
    %v161 = vunpack.c.l.b16 %v80
    %v162 = vunpack.c.h.b16 %v80
    %v163 = vunpack.c.l.b16 %v81
    %v164 = vunpack.c.l.b16 %v82
    %v165 = vunpack.c.h.b16 %v82
    %v166 = vunpack.c.l.b16 %v83
    %v167 = vunpack.c.l.b16 %v84
    %v168 = vunpack.c.h.b16 %v84
    %v169 = vunpack.c.l.b16 %v85
    %v170 = vunpack.c.l.b16 %v86
    %v171 = vunpack.c.h.b16 %v86
    %v172 = vunpack.c.l.b16 %v87
    %v173 = vunpack.c.l.b16 %v88
    %v174 = vunpack.c.h.b16 %v88
    %v175 = vunpack.c.l.b16 %v89
    %v176 = vunpack.c.l.b16 %v90
    %v177 = vunpack.c.h.b16 %v90
    %v178 = vunpack.c.l.b16 %v91
    %v179 = vunpack.c.l.b16 %v92
    %v180 = vunpack.c.h.b16 %v92
    %v181 = vunpack.c.l.b16 %v93
    %v182 = vunpack.c.l.b16 %v94
    %v183 = vunpack.c.h.b16 %v94
    %v184 = vunpack.c.l.b16 %v95
    %v185 = vunpack.c.l.b16 %v96
    %v186 = vunpack.c.h.b16 %v96
    %v187 = vunpack.c.l.b16 %v97
    %v188 = vunpack.c.l.b16 %v98
    %v189 = vunpack.c.h.b16 %v98
    %v190 = vunpack.c.l.b16 %v99
    %v191 = vunpack.c.l.b16 %v100
    %v192 = vunpack.c.h.b16 %v100
    %v193 = vunpack.c.l.b16 %v101
    %v194 = vunpack.c.l.b16 %v102
    %v195 = vunpack.c.h.b16 %v102
    %v196 = vunpack.c.l.b16 %v103
    %v197 = vunpack.c.l.b16 %v104
    %v198 = vunpack.c.h.b16 %v104
    %v199 = vunpack.c.l.b16 %v105
    %v200 = vunpack.c.l.b16 %v106
    %v201 = vunpack.c.h.b16 %v106
    %v202 = vunpack.c.l.b16 %v107
    %v203 = vunpack.c.l.b16 %v108
    %v204 = vunpack.c.h.b16 %v108
    %v205 = vunpack.c.l.b16 %v109
    %v206 = vunpack.c.l.b16 %v110
    %v207 = vunpack.c.h.b16 %v110
    %v208 = vunpack.c.l.b16 %v111
    %v209 = vpack.c.b16 %v164, %v161
    %v210 = vpack.c.b16 %v165, %v162
    %v211 = vpack.c.b16 %v166, %v163
    %v212 = vpack.c.b16 %v170, %v167
    %v213 = vpack.c.b16 %v171, %v168
    %v214 = vpack.c.b16 %v172, %v169
    %v215 = vpack.c.b16 %v176, %v173
    %v216 = vpack.c.b16 %v177, %v174
    %v217 = vpack.c.b16 %v178, %v175
    %v218 = vpack.c.b16 %v182, %v179
    %v219 = vpack.c.b16 %v183, %v180
    %v220 = vpack.c.b16 %v184, %v181
    %v221 = vpack.c.b16 %v188, %v185
    %v222 = vpack.c.b16 %v189, %v186
    %v223 = vpack.c.b16 %v190, %v187
    %v224 = vpack.c.b16 %v194, %v191
    %v225 = vpack.c.b16 %v195, %v192
    %v226 = vpack.c.b16 %v196, %v193
    %v227 = vpack.c.b16 %v200, %v197
    %v228 = vpack.c.b16 %v201, %v198
    %v229 = vpack.c.b16 %v202, %v199
    %v230 = vpack.c.b16 %v206, %v203
    %v231 = vpack.c.b16 %v207, %v204
    %v232 = vpack.c.b16 %v208, %v205
    %257 = vmatprep.subr.bf16.mxu0 %v210
    %258 = vmatpush1.bf16.msra.mxu0 %v209
    %259 = vmatprep.subr.bf16.mxu0 %v213
    %260 = vmatpush1.bf16.msra.mxu0 %v212
    %261 = vmatprep.subr.bf16.mxu0 %v216
    %262 = vmatpush1.bf16.msra.mxu0 %v215
    %263 = vmatprep.subr.bf16.mxu0 %v219
    %264 = vmatpush1.bf16.msra.mxu0 %v218
    %265 = vmatprep.subr.bf16.mxu0 %v222
    %266 = vmatpush1.bf16.msra.mxu0 %v221
    %267 = vmatprep.subr.bf16.mxu0 %v225
    %268 = vmatpush1.bf16.msra.mxu0 %v224
    %269 = vmatprep.subr.bf16.mxu0 %v228
    %270 = vmatpush1.bf16.msra.mxu0 %v227
    %271 = vmatprep.subr.bf16.mxu0 %v231
    %272 = vmatpush1.bf16.msra.mxu0 %v230
    %273 = vmatprep.subr.bf16.mxu0 0
    %274 = vmatpush1.bf16.msra.mxu0 0
    %275 = vmatprep.subr.bf16.mxu0 0
    %276 = vmatpush1.bf16.msra.mxu0 0
    %277 = vmatprep.subr.bf16.mxu0 0
    %278 = vmatpush1.bf16.msra.mxu0 0
    %279 = vmatprep.subr.bf16.mxu0 0
    %280 = vmatpush1.bf16.msra.mxu0 0
    %281 = vmatprep.subr.bf16.mxu0 0
    %282 = vmatpush1.bf16.msra.mxu0 0
    %283 = vmatprep.subr.bf16.mxu0 0
    %284 = vmatpush1.bf16.msra.mxu0 0
    %285 = vmatprep.subr.bf16.mxu0 0
    %286 = vmatpush1.bf16.msra.mxu0 0
    %287 = vmatprep.subr.bf16.mxu0 0
    %288 = vmatpush1.bf16.msra.mxu0 0
    %289 = vmatprep.mubr.bf16.mxu0 0
    %290 = vmatmul.mubr.bf16.gmra.mrb[0].mxu0 %v76
    %v291 = vpop.f32.mrb[0].mxu0
    %v292 = vadd.f32 %v117, %v291
    %v293 = vpop.f32.mrb[0].mxu0
    %v294 = vadd.f32 %v121, %v293
    %v295 = vpop.f32.mrb[0].mxu0
    %v296 = vadd.f32 %v117, %v295
    %v297 = vpop.f32.mrb[0].mxu0
    %v298 = vadd.f32 %v121, %v297
    %299 = vmatprep.mubr.bf16.mxu0 0
    %300 = vmatmul.mubr.bf16.gmra.mrb[0].mxu0 %v77
    %v301 = vpop.f32.mrb[0].mxu0
    %v302 = vadd.f32 %v117, %v301
    %v303 = vpop.f32.mrb[0].mxu0
    %v304 = vadd.f32 %v121, %v303
    %v305 = vpop.f32.mrb[0].mxu0
    %v306 = vadd.f32 %v117, %v305
    %v307 = vpop.f32.mrb[0].mxu0
    %v308 = vadd.f32 %v121, %v307
    %309 = vmatprep.mubr.bf16.mxu0 0
    %310 = vmatmul.mubr.bf16.gmra.mrb[0].mxu0 %v78
    %v311 = vpop.f32.mrb[0].mxu0
    %v312 = vadd.f32 %v117, %v311
    %v313 = vpop.f32.mrb[0].mxu0
    %v314 = vadd.f32 %v121, %v313
    %v315 = vpop.f32.mrb[0].mxu0
    %v316 = vadd.f32 %v117, %v315
    %v317 = vpop.f32.mrb[0].mxu0
    %v318 = vadd.f32 %v121, %v317
    %319 = vmatprep.mubr.bf16.mxu0 0
    %320 = vmatmul.mubr.bf16.gmra.mrb[0].mxu0 %v79
    %v321 = vpop.f32.mrb[0].mxu0
    %v322 = vadd.f32 %v117, %v321
    %v323 = vpop.f32.mrb[0].mxu0
    %v324 = vadd.f32 %v121, %v323
    %v325 = vpop.f32.mrb[0].mxu0
    %v326 = vadd.f32 %v117, %v325
    %v327 = vpop.f32.mrb[0].mxu0
    %v328 = vadd.f32 %v121, %v327
    %329 = vdwg.mxu0
    %330 = vmatprep.subr.bf16.mxu0 0
    %331 = vmatpush1.bf16.msra.mxu0 %v211
    %332 = vmatprep.subr.bf16.mxu0 0
    %333 = vmatpush1.bf16.msra.mxu0 %v214
    %334 = vmatprep.subr.bf16.mxu0 0
    %335 = vmatpush1.bf16.msra.mxu0 %v217
    %336 = vmatprep.subr.bf16.mxu0 0
    %337 = vmatpush1.bf16.msra.mxu0 %v220
    %338 = vmatprep.subr.bf16.mxu0 0
    %339 = vmatpush1.bf16.msra.mxu0 %v223
    %340 = vmatprep.subr.bf16.mxu0 0
    %341 = vmatpush1.bf16.msra.mxu0 %v226
    %342 = vmatprep.subr.bf16.mxu0 0
    %343 = vmatpush1.bf16.msra.mxu0 %v229
    %344 = vmatprep.subr.bf16.mxu0 0
    %345 = vmatpush1.bf16.msra.mxu0 %v232
    %346 = vmatprep.subr.bf16.mxu0 0
    %347 = vmatpush1.bf16.msra.mxu0 0
    %348 = vmatprep.subr.bf16.mxu0 0
    %349 = vmatpush1.bf16.msra.mxu0 0
    %350 = vmatprep.subr.bf16.mxu0 0
    %351 = vmatpush1.bf16.msra.mxu0 0
    %352 = vmatprep.subr.bf16.mxu0 0
    %353 = vmatpush1.bf16.msra.mxu0 0
    %354 = vmatprep.subr.bf16.mxu0 0
    %355 = vmatpush1.bf16.msra.mxu0 0
    %356 = vmatprep.subr.bf16.mxu0 0
    %357 = vmatpush1.bf16.msra.mxu0 0
    %358 = vmatprep.subr.bf16.mxu0 0
    %359 = vmatpush1.bf16.msra.mxu0 0
    %360 = vmatprep.subr.bf16.mxu0 0
    %361 = vmatpush1.bf16.msra.mxu0 0
    %362 = vmatprep.mubr.bf16.mxu0 0
    %363 = vmatmul.mubr.bf16.gmra.mrb[0].mxu0 %v76
    %v364 = vpop.f32.mrb[0].mxu0
    %v365 = vadd.f32 %v125, %v364
    %v366 = vpop.f32.mrb[0].mxu0
    %v367 = vpop.f32.mrb[0].mxu0
    %v368 = vadd.f32 %v125, %v367
    %v369 = vpop.f32.mrb[0].mxu0
    %370 = vmatprep.mubr.bf16.mxu0 0
    %371 = vmatmul.mubr.bf16.gmra.mrb[0].mxu0 %v77
    %v372 = vpop.f32.mrb[0].mxu0
    %v373 = vadd.f32 %v125, %v372
    %v374 = vpop.f32.mrb[0].mxu0
    %v375 = vpop.f32.mrb[0].mxu0
    %v376 = vadd.f32 %v125, %v375
    %v377 = vpop.f32.mrb[0].mxu0
    %378 = vmatprep.mubr.bf16.mxu0 0
    %379 = vmatmul.mubr.bf16.gmra.mrb[0].mxu0 %v78
    %v380 = vpop.f32.mrb[0].mxu0
    %v381 = vadd.f32 %v125, %v380
    %v382 = vpop.f32.mrb[0].mxu0
    %v383 = vpop.f32.mrb[0].mxu0
    %v384 = vadd.f32 %v125, %v383
    %v385 = vpop.f32.mrb[0].mxu0
    %386 = vmatprep.mubr.bf16.mxu0 0
    %387 = vmatmul.mubr.bf16.gmra.mrb[0].mxu0 %v79
    %v388 = vpop.f32.mrb[0].mxu0
    %v389 = vadd.f32 %v125, %v388
    %v390 = vpop.f32.mrb[0].mxu0
    %v391 = vpop.f32.mrb[0].mxu0
    %v392 = vadd.f32 %v125, %v391
    %v393 = vpop.f32.mrb[0].mxu0
    %394 = vdwg.mxu0
    %395 = vst [vmem:[#allocation3] sm:$0xff] %v292
    %396 = vst [vmem:[#allocation3 + $0x8] sm:$0xff] %v294
    %397 = vst [vmem:[#allocation3 + $0x10] sm:$0xff] %v365
    %398 = vst [vmem:[#allocation3 + $0x18] sm:$0xff] %v296
    %399 = vst [vmem:[#allocation3 + $0x20] sm:$0xff] %v298
    %400 = vst [vmem:[#allocation3 + $0x28] sm:$0xff] %v368
    %401 = vst [vmem:[#allocation3 + $0x30] sm:$0xff] %v302
    %402 = vst [vmem:[#allocation3 + $0x38] sm:$0xff] %v304
    %403 = vst [vmem:[#allocation3 + $0x40] sm:$0xff] %v373
    %404 = vst [vmem:[#allocation3 + $0x48] sm:$0xff] %v306
    %405 = vst [vmem:[#allocation3 + $0x50] sm:$0xff] %v308
    %406 = vst [vmem:[#allocation3 + $0x58] sm:$0xff] %v376
    %407 = vst [vmem:[#allocation3 + $0x60] sm:$0xff] %v312
    %408 = vst [vmem:[#allocation3 + $0x68] sm:$0xff] %v314
    %409 = vst [vmem:[#allocation3 + $0x70] sm:$0xff] %v381
    %410 = vst [vmem:[#allocation3 + $0x78] sm:$0xff] %v316
    %411 = vst [vmem:[#allocation3 + $0x80] sm:$0xff] %v318
    %412 = vst [vmem:[#allocation3 + $0x88] sm:$0xff] %v384
    %413 = vst [vmem:[#allocation3 + $0x90] sm:$0xff] %v322
    %414 = vst [vmem:[#allocation3 + $0x98] sm:$0xff] %v324
    %415 = vst [vmem:[#allocation3 + $0xa0] sm:$0xff] %v389
    %416 = vst [vmem:[#allocation3 + $0xa8] sm:$0xff] %v326
    %417 = vst [vmem:[#allocation3 + $0xb0] sm:$0xff] %v328
    %418 = vst [vmem:[#allocation3 + $0xb8] sm:$0xff] %v392
    %v419 = vld [vmem:[#allocation9] sm:$0xff]
    %v420 = vld [vmem:[#allocation9 + $0x8] sm:$0xf]
    %v421 = vld [vmem:[#allocation9 + $0xc] sm:$0xff]
    %v422 = vld [vmem:[#allocation9 + $0x14] sm:$0xf]
    %v423 = vld [vmem:[#allocation9 + $0x18] sm:$0xff]
    %v424 = vld [vmem:[#allocation9 + $0x20] sm:$0xf]
    %v425 = vld [vmem:[#allocation9 + $0x24] sm:$0xff]
    %v426 = vld [vmem:[#allocation9 + $0x2c] sm:$0xf]
    %v427 = vld [vmem:[#allocation9 + $0x30] sm:$0xff]
    %v428 = vld [vmem:[#allocation9 + $0x38] sm:$0xf]
    %v429 = vld [vmem:[#allocation9 + $0x3c] sm:$0xff]
    %v430 = vld [vmem:[#allocation9 + $0x44] sm:$0xf]
    %v431 = vld [vmem:[#allocation9 + $0x48] sm:$0xff]
    %v432 = vld [vmem:[#allocation9 + $0x50] sm:$0xf]
    %v433 = vld [vmem:[#allocation9 + $0x54] sm:$0xff]
    %v434 = vld [vmem:[#allocation9 + $0x5c] sm:$0xf]
    %v435 = vld [vmem:[#allocation9 + $0x60] sm:$0xff]
    %v436 = vld [vmem:[#allocation9 + $0x68] sm:$0xf]
    %v437 = vld [vmem:[#allocation9 + $0x6c] sm:$0xff]
    %v438 = vld [vmem:[#allocation9 + $0x74] sm:$0xf]
    %v439 = vld [vmem:[#allocation9 + $0x78] sm:$0xff]
    %v440 = vld [vmem:[#allocation9 + $0x80] sm:$0xf]
    %v441 = vld [vmem:[#allocation9 + $0x84] sm:$0xff]
    %v442 = vld [vmem:[#allocation9 + $0x8c] sm:$0xf]
    %v443 = vld [vmem:[#allocation9 + $0x90] sm:$0xff]
    %v444 = vld [vmem:[#allocation9 + $0x98] sm:$0xf]
    %v445 = vld [vmem:[#allocation9 + $0x9c] sm:$0xff]
    %v446 = vld [vmem:[#allocation9 + $0xa4] sm:$0xf]
    %v447 = vld [vmem:[#allocation9 + $0xa8] sm:$0xff]
    %v448 = vld [vmem:[#allocation9 + $0xb0] sm:$0xf]
    %v449 = vld [vmem:[#allocation9 + $0xb4] sm:$0xff]
    %v450 = vld [vmem:[#allocation9 + $0xbc] sm:$0xf]
    %v451 = vld [vmem:[%s4] sm:$0x1]
    %v453 = vlaneseq
    %v454 = vshrl.u32 %v453, 7
    %v455 = vsub.s32 0, %v454
    %v456 = vrot.slane %v451, %v455
    %v458 = vld [vmem:[#allocation2] sm:$0xff]
    %v459 = vld [vmem:[#allocation3] sm:$0xff]
    %v460 = vld [vmem:[#allocation3 + $0x8] sm:$0xff]
    %v461 = vld [vmem:[#allocation3 + $0x10] sm:$0xff]
    %v462 = vpack.c.bf16 %v458, %v458
    %v495 = vunpack.c.l.b16 %v419
    %v496 = vunpack.c.h.b16 %v419
    %v497 = vunpack.c.l.b16 %v420
    %v498 = vunpack.c.l.b16 %v421
    %v499 = vunpack.c.h.b16 %v421
    %v500 = vunpack.c.l.b16 %v422
    %v501 = vunpack.c.l.b16 %v423
    %v502 = vunpack.c.h.b16 %v423
    %v503 = vunpack.c.l.b16 %v424
    %v504 = vunpack.c.l.b16 %v425
    %v505 = vunpack.c.h.b16 %v425
    %v506 = vunpack.c.l.b16 %v426
    %v507 = vunpack.c.l.b16 %v427
    %v508 = vunpack.c.h.b16 %v427
    %v509 = vunpack.c.l.b16 %v428
    %v510 = vunpack.c.l.b16 %v429
    %v511 = vunpack.c.h.b16 %v429
    %v512 = vunpack.c.l.b16 %v430
    %v513 = vunpack.c.l.b16 %v431
    %v514 = vunpack.c.h.b16 %v431
    %v515 = vunpack.c.l.b16 %v432
    %v516 = vunpack.c.l.b16 %v433
    %v517 = vunpack.c.h.b16 %v433
    %v518 = vunpack.c.l.b16 %v434
    %v519 = vunpack.c.l.b16 %v435
    %v520 = vunpack.c.h.b16 %v435
    %v521 = vunpack.c.l.b16 %v436
    %v522 = vunpack.c.l.b16 %v437
    %v523 = vunpack.c.h.b16 %v437
    %v524 = vunpack.c.l.b16 %v438
    %v525 = vunpack.c.l.b16 %v439
    %v526 = vunpack.c.h.b16 %v439
    %v527 = vunpack.c.l.b16 %v440
    %v528 = vunpack.c.l.b16 %v441
    %v529 = vunpack.c.h.b16 %v441
    %v530 = vunpack.c.l.b16 %v442
    %v531 = vunpack.c.l.b16 %v443
    %v532 = vunpack.c.h.b16 %v443
    %v533 = vunpack.c.l.b16 %v444
    %v534 = vunpack.c.l.b16 %v445
    %v535 = vunpack.c.h.b16 %v445
    %v536 = vunpack.c.l.b16 %v446
    %v537 = vunpack.c.l.b16 %v447
    %v538 = vunpack.c.h.b16 %v447
    %v539 = vunpack.c.l.b16 %v448
    %v540 = vunpack.c.l.b16 %v449
    %v541 = vunpack.c.h.b16 %v449
    %v542 = vunpack.c.l.b16 %v450
    %v543 = vpack.c.b16 %v498, %v495
    %v544 = vpack.c.b16 %v499, %v496
    %v545 = vpack.c.b16 %v500, %v497
    %v546 = vpack.c.b16 %v504, %v501
    %v547 = vpack.c.b16 %v505, %v502
    %v548 = vpack.c.b16 %v506, %v503
    %v549 = vpack.c.b16 %v510, %v507
    %v550 = vpack.c.b16 %v511, %v508
    %v551 = vpack.c.b16 %v512, %v509
    %v552 = vpack.c.b16 %v516, %v513
    %v553 = vpack.c.b16 %v517, %v514
    %v554 = vpack.c.b16 %v518, %v515
    %v555 = vpack.c.b16 %v522, %v519
    %v556 = vpack.c.b16 %v523, %v520
    %v557 = vpack.c.b16 %v524, %v521
    %v558 = vpack.c.b16 %v528, %v525
    %v559 = vpack.c.b16 %v529, %v526
    %v560 = vpack.c.b16 %v530, %v527
    %v561 = vpack.c.b16 %v534, %v531
    %v562 = vpack.c.b16 %v535, %v532
    %v563 = vpack.c.b16 %v536, %v533
    %v564 = vpack.c.b16 %v540, %v537
    %v565 = vpack.c.b16 %v541, %v538
    %v566 = vpack.c.b16 %v542, %v539
    %591 = vmatprep.subr.bf16.mxu0 %v544
    %592 = vmatpush1.bf16.msra.mxu0 %v543
    %593 = vmatprep.subr.bf16.mxu0 %v547
    %594 = vmatpush1.bf16.msra.mxu0 %v546
    %595 = vmatprep.subr.bf16.mxu0 %v550
    %596 = vmatpush1.bf16.msra.mxu0 %v549
    %597 = vmatprep.subr.bf16.mxu0 %v553
    %598 = vmatpush1.bf16.msra.mxu0 %v552
    %599 = vmatprep.subr.bf16.mxu0 %v556
    %600 = vmatpush1.bf16.msra.mxu0 %v555
    %601 = vmatprep.subr.bf16.mxu0 %v559
    %602 = vmatpush1.bf16.msra.mxu0 %v558
    %603 = vmatprep.subr.bf16.mxu0 %v562
    %604 = vmatpush1.bf16.msra.mxu0 %v561
    %605 = vmatprep.subr.bf16.mxu0 %v565
    %606 = vmatpush1.bf16.msra.mxu0 %v564
    %607 = vmatprep.subr.bf16.mxu0 0
    %608 = vmatpush1.bf16.msra.mxu0 0
    %609 = vmatprep.subr.bf16.mxu0 0
    %610 = vmatpush1.bf16.msra.mxu0 0
    %611 = vmatprep.subr.bf16.mxu0 0
    %612 = vmatpush1.bf16.msra.mxu0 0
    %613 = vmatprep.subr.bf16.mxu0 0
    %614 = vmatpush1.bf16.msra.mxu0 0
    %615 = vmatprep.subr.bf16.mxu0 0
    %616 = vmatpush1.bf16.msra.mxu0 0
    %617 = vmatprep.subr.bf16.mxu0 0
    %618 = vmatpush1.bf16.msra.mxu0 0
    %619 = vmatprep.subr.bf16.mxu0 0
    %620 = vmatpush1.bf16.msra.mxu0 0
    %621 = vmatprep.subr.bf16.mxu0 0
    %622 = vmatpush1.bf16.msra.mxu0 0
    %623 = vmatprep.mubr.bf16.mxu0 0
    %624 = vmatmul.mubr.bf16.gmra.mrb[0].mxu0 %v462
    %v625 = vpop.f32.mrb[0].mxu0
    %v626 = vadd.f32 0.0, %v625
    %v627 = vpop.f32.mrb[0].mxu0
    %v628 = vadd.f32 0.0, %v627
    %v629 = vpop.f32.mrb[0].mxu0
    %v630 = vpop.f32.mrb[0].mxu0
    %631 = vdwg.mxu0
    %632 = vmatprep.subr.bf16.mxu0 0
    %633 = vmatpush1.bf16.msra.mxu0 %v545
    %634 = vmatprep.subr.bf16.mxu0 0
    %635 = vmatpush1.bf16.msra.mxu0 %v548
    %636 = vmatprep.subr.bf16.mxu0 0
    %637 = vmatpush1.bf16.msra.mxu0 %v551
    %638 = vmatprep.subr.bf16.mxu0 0
    %639 = vmatpush1.bf16.msra.mxu0 %v554
    %640 = vmatprep.subr.bf16.mxu0 0
    %641 = vmatpush1.bf16.msra.mxu0 %v557
    %642 = vmatprep.subr.bf16.mxu0 0
    %643 = vmatpush1.bf16.msra.mxu0 %v560
    %644 = vmatprep.subr.bf16.mxu0 0
    %645 = vmatpush1.bf16.msra.mxu0 %v563
    %646 = vmatprep.subr.bf16.mxu0 0
    %647 = vmatpush1.bf16.msra.mxu0 %v566
    %648 = vmatprep.subr.bf16.mxu0 0
    %649 = vmatpush1.bf16.msra.mxu0 0
    %650 = vmatprep.subr.bf16.mxu0 0
    %651 = vmatpush1.bf16.msra.mxu0 0
    %652 = vmatprep.subr.bf16.mxu0 0
    %653 = vmatpush1.bf16.msra.mxu0 0
    %654 = vmatprep.subr.bf16.mxu0 0
    %655 = vmatpush1.bf16.msra.mxu0 0
    %656 = vmatprep.subr.bf16.mxu0 0
    %657 = vmatpush1.bf16.msra.mxu0 0
    %658 = vmatprep.subr.bf16.mxu0 0
    %659 = vmatpush1.bf16.msra.mxu0 0
    %660 = vmatprep.subr.bf16.mxu0 0
    %661 = vmatpush1.bf16.msra.mxu0 0
    %662 = vmatprep.subr.bf16.mxu0 0
    %663 = vmatpush1.bf16.msra.mxu0 0
    %664 = vmatprep.mubr.bf16.mxu0 0
    %665 = vmatmul.mubr.bf16.gmra.mrb[0].mxu0 %v462
    %v666 = vpop.f32.mrb[0].mxu0
    %v667 = vadd.f32 0.0, %v666
    %v668 = vpop.f32.mrb[0].mxu0
    %v669 = vpop.f32.mrb[0].mxu0
    %v670 = vpop.f32.mrb[0].mxu0
    %671 = vdwg.mxu0
    %v672 = vadd.f32 %v459, %v626
    %v673 = vxor.u32 %v672, 2147483648
    %v674 = vmul.f32 %v673, 1.442695
    %v675 = vpow.pop %v674
    %v676 = vadd.f32 %v675, 1.0
    %v677 = vrcp.pop %v676
    %v678 = vmul.f32 1.0, %v677
    %v679 = vadd.f32 %v460, %v628
    %v680 = vxor.u32 %v679, 2147483648
    %v681 = vmul.f32 %v680, 1.442695
    %v682 = vpow.pop %v681
    %v683 = vadd.f32 %v682, 1.0
    %v684 = vrcp.pop %v683
    %v685 = vmul.f32 1.0, %v684
    %v686 = vadd.f32 %v667, %v456
    %v687 = vmul.f32 %v678, %v686
    %v688 = vadd.f32 %v461, %v687
    %v689 = vtanh.pop %v688
    %v690 = vsub.f32 1.0, %v685
    %v691 = vmul.f32 %v690, %v689
    %v692 = vmul.f32 %v685, %v458
    %v693 = vadd.f32 %v691, %v692
    %694 = vst [vmem:[#allocation10] sm:$0xff] %v693
    %s695 = scalar_lea.vmem [#allocation3], 24
    %v696 = vld [vmem:[%s695] sm:$0xff]
    %v697 = vld [vmem:[%s695 + $0x8] sm:$0xff]
    %v698 = vld [vmem:[%s695 + $0x10] sm:$0xff]
    %v699 = vpack.c.bf16 %v693, %v693
    %700 = vmatprep.subr.bf16.mxu0 %v544
    %701 = vmatpush1.bf16.msra.mxu0 %v543
    %702 = vmatprep.subr.bf16.mxu0 %v547
    %703 = vmatpush1.bf16.msra.mxu0 %v546
    %704 = vmatprep.subr.bf16.mxu0 %v550
    %705 = vmatpush1.bf16.msra.mxu0 %v549
    %706 = vmatprep.subr.bf16.mxu0 %v553
    %707 = vmatpush1.bf16.msra.mxu0 %v552
    %708 = vmatprep.subr.bf16.mxu0 %v556
    %709 = vmatpush1.bf16.msra.mxu0 %v555
    %710 = vmatprep.subr.bf16.mxu0 %v559
    %711 = vmatpush1.bf16.msra.mxu0 %v558
    %712 = vmatprep.subr.bf16.mxu0 %v562
    %713 = vmatpush1.bf16.msra.mxu0 %v561
    %714 = vmatprep.subr.bf16.mxu0 %v565
    %715 = vmatpush1.bf16.msra.mxu0 %v564
    %716 = vmatprep.subr.bf16.mxu0 0
    %717 = vmatpush1.bf16.msra.mxu0 0
    %718 = vmatprep.subr.bf16.mxu0 0
    %719 = vmatpush1.bf16.msra.mxu0 0
    %720 = vmatprep.subr.bf16.mxu0 0
    %721 = vmatpush1.bf16.msra.mxu0 0
    %722 = vmatprep.subr.bf16.mxu0 0
    %723 = vmatpush1.bf16.msra.mxu0 0
    %724 = vmatprep.subr.bf16.mxu0 0
    %725 = vmatpush1.bf16.msra.mxu0 0
    %726 = vmatprep.subr.bf16.mxu0 0
    %727 = vmatpush1.bf16.msra.mxu0 0
    %728 = vmatprep.subr.bf16.mxu0 0
    %729 = vmatpush1.bf16.msra.mxu0 0
    %730 = vmatprep.subr.bf16.mxu0 0
    %731 = vmatpush1.bf16.msra.mxu0 0
    %732 = vmatprep.mubr.bf16.mxu0 0
    %733 = vmatmul.mubr.bf16.gmra.mrb[0].mxu0 %v699
    %v734 = vpop.f32.mrb[0].mxu0
    %v735 = vadd.f32 0.0, %v734
    %v736 = vpop.f32.mrb[0].mxu0
    %v737 = vadd.f32 0.0, %v736
    %v738 = vpop.f32.mrb[0].mxu0
    %v739 = vpop.f32.mrb[0].mxu0
    %740 = vdwg.mxu0
    %741 = vmatprep.subr.bf16.mxu0 0
    %742 = vmatpush1.bf16.msra.mxu0 %v545
    %743 = vmatprep.subr.bf16.mxu0 0
    %744 = vmatpush1.bf16.msra.mxu0 %v548
    %745 = vmatprep.subr.bf16.mxu0 0
    %746 = vmatpush1.bf16.msra.mxu0 %v551
    %747 = vmatprep.subr.bf16.mxu0 0
    %748 = vmatpush1.bf16.msra.mxu0 %v554
    %749 = vmatprep.subr.bf16.mxu0 0
    %750 = vmatpush1.bf16.msra.mxu0 %v557
    %751 = vmatprep.subr.bf16.mxu0 0
    %752 = vmatpush1.bf16.msra.mxu0 %v560
    %753 = vmatprep.subr.bf16.mxu0 0
    %754 = vmatpush1.bf16.msra.mxu0 %v563
    %755 = vmatprep.subr.bf16.mxu0 0
    %756 = vmatpush1.bf16.msra.mxu0 %v566
    %757 = vmatprep.subr.bf16.mxu0 0
    %758 = vmatpush1.bf16.msra.mxu0 0
    %759 = vmatprep.subr.bf16.mxu0 0
    %760 = vmatpush1.bf16.msra.mxu0 0
    %761 = vmatprep.subr.bf16.mxu0 0
    %762 = vmatpush1.bf16.msra.mxu0 0
    %763 = vmatprep.subr.bf16.mxu0 0
    %764 = vmatpush1.bf16.msra.mxu0 0
    %765 = vmatprep.subr.bf16.mxu0 0
    %766 = vmatpush1.bf16.msra.mxu0 0
    %767 = vmatprep.subr.bf16.mxu0 0
    %768 = vmatpush1.bf16.msra.mxu0 0
    %769 = vmatprep.subr.bf16.mxu0 0
    %770 = vmatpush1.bf16.msra.mxu0 0
    %771 = vmatprep.subr.bf16.mxu0 0
    %772 = vmatpush1.bf16.msra.mxu0 0
    %773 = vmatprep.mubr.bf16.mxu0 0
    %774 = vmatmul.mubr.bf16.gmra.mrb[0].mxu0 %v699
    %v775 = vpop.f32.mrb[0].mxu0
    %v776 = vadd.f32 0.0, %v775
    %v777 = vpop.f32.mrb[0].mxu0
    %v778 = vpop.f32.mrb[0].mxu0
    %v779 = vpop.f32.mrb[0].mxu0
    %780 = vdwg.mxu0
    %v781 = vadd.f32 %v696, %v735
    %v782 = vxor.u32 %v781, 2147483648
    %v783 = vmul.f32 %v782, 1.442695
    %v784 = vpow.pop %v783
    %v785 = vadd.f32 %v784, 1.0
    %v786 = vrcp.pop %v785
    %v787 = vmul.f32 1.0, %v786
    %v788 = vadd.f32 %v697, %v737
    %v789 = vxor.u32 %v788, 2147483648
    %v790 = vmul.f32 %v789, 1.442695
    %v791 = vpow.pop %v790
    %v792 = vadd.f32 %v791, 1.0
    %v793 = vrcp.pop %v792
    %v794 = vmul.f32 1.0, %v793
    %v795 = vadd.f32 %v776, %v456
    %v796 = vmul.f32 %v787, %v795
    %v797 = vadd.f32 %v698, %v796
    %v798 = vtanh.pop %v797
    %v799 = vsub.f32 1.0, %v794
    %v800 = vmul.f32 %v799, %v798
    %v801 = vmul.f32 %v794, %v693
    %v802 = vadd.f32 %v800, %v801
    %s803 = scalar_lea.vmem [#allocation10], 8
    %804 = vst [vmem:[%s803] sm:$0xff] %v802
    %s805 = scalar_lea.vmem [#allocation3], 48
    %v806 = vld [vmem:[%s805] sm:$0xff]
    %v807 = vld [vmem:[%s805 + $0x8] sm:$0xff]
    %v808 = vld [vmem:[%s805 + $0x10] sm:$0xff]
    %v809 = vpack.c.bf16 %v802, %v802
    %810 = vmatprep.subr.bf16.mxu0 %v544
    %811 = vmatpush1.bf16.msra.mxu0 %v543
    %812 = vmatprep.subr.bf16.mxu0 %v547
    %813 = vmatpush1.bf16.msra.mxu0 %v546
    %814 = vmatprep.subr.bf16.mxu0 %v550
    %815 = vmatpush1.bf16.msra.mxu0 %v549
    %816 = vmatprep.subr.bf16.mxu0 %v553
    %817 = vmatpush1.bf16.msra.mxu0 %v552
    %818 = vmatprep.subr.bf16.mxu0 %v556
    %819 = vmatpush1.bf16.msra.mxu0 %v555
    %820 = vmatprep.subr.bf16.mxu0 %v559
    %821 = vmatpush1.bf16.msra.mxu0 %v558
    %822 = vmatprep.subr.bf16.mxu0 %v562
    %823 = vmatpush1.bf16.msra.mxu0 %v561
    %824 = vmatprep.subr.bf16.mxu0 %v565
    %825 = vmatpush1.bf16.msra.mxu0 %v564
    %826 = vmatprep.subr.bf16.mxu0 0
    %827 = vmatpush1.bf16.msra.mxu0 0
    %828 = vmatprep.subr.bf16.mxu0 0
    %829 = vmatpush1.bf16.msra.mxu0 0
    %830 = vmatprep.subr.bf16.mxu0 0
    %831 = vmatpush1.bf16.msra.mxu0 0
    %832 = vmatprep.subr.bf16.mxu0 0
    %833 = vmatpush1.bf16.msra.mxu0 0
    %834 = vmatprep.subr.bf16.mxu0 0
    %835 = vmatpush1.bf16.msra.mxu0 0
    %836 = vmatprep.subr.bf16.mxu0 0
    %837 = vmatpush1.bf16.msra.mxu0 0
    %838 = vmatprep.subr.bf16.mxu0 0
    %839 = vmatpush1.bf16.msra.mxu0 0
    %840 = vmatprep.subr.bf16.mxu0 0
    %841 = vmatpush1.bf16.msra.mxu0 0
    %842 = vmatprep.mubr.bf16.mxu0 0
    %843 = vmatmul.mubr.bf16.gmra.mrb[0].mxu0 %v809
    %v844 = vpop.f32.mrb[0].mxu0
    %v845 = vadd.f32 0.0, %v844
    %v846 = vpop.f32.mrb[0].mxu0
    %v847 = vadd.f32 0.0, %v846
    %v848 = vpop.f32.mrb[0].mxu0
    %v849 = vpop.f32.mrb[0].mxu0
    %850 = vdwg.mxu0
    %851 = vmatprep.subr.bf16.mxu0 0
    %852 = vmatpush1.bf16.msra.mxu0 %v545
    %853 = vmatprep.subr.bf16.mxu0 0
    %854 = vmatpush1.bf16.msra.mxu0 %v548
    %855 = vmatprep.subr.bf16.mxu0 0
    %856 = vmatpush1.bf16.msra.mxu0 %v551
    %857 = vmatprep.subr.bf16.mxu0 0
    %858 = vmatpush1.bf16.msra.mxu0 %v554
    %859 = vmatprep.subr.bf16.mxu0 0
    %860 = vmatpush1.bf16.msra.mxu0 %v557
    %861 = vmatprep.subr.bf16.mxu0 0
    %862 = vmatpush1.bf16.msra.mxu0 %v560
    %863 = vmatprep.subr.bf16.mxu0 0
    %864 = vmatpush1.bf16.msra.mxu0 %v563
    %865 = vmatprep.subr.bf16.mxu0 0
    %866 = vmatpush1.bf16.msra.mxu0 %v566
    %867 = vmatprep.subr.bf16.mxu0 0
    %868 = vmatpush1.bf16.msra.mxu0 0
    %869 = vmatprep.subr.bf16.mxu0 0
    %870 = vmatpush1.bf16.msra.mxu0 0
    %871 = vmatprep.subr.bf16.mxu0 0
    %872 = vmatpush1.bf16.msra.mxu0 0
    %873 = vmatprep.subr.bf16.mxu0 0
    %874 = vmatpush1.bf16.msra.mxu0 0
    %875 = vmatprep.subr.bf16.mxu0 0
    %876 = vmatpush1.bf16.msra.mxu0 0
    %877 = vmatprep.subr.bf16.mxu0 0
    %878 = vmatpush1.bf16.msra.mxu0 0
    %879 = vmatprep.subr.bf16.mxu0 0
    %880 = vmatpush1.bf16.msra.mxu0 0
    %881 = vmatprep.subr.bf16.mxu0 0
    %882 = vmatpush1.bf16.msra.mxu0 0
    %883 = vmatprep.mubr.bf16.mxu0 0
    %884 = vmatmul.mubr.bf16.gmra.mrb[0].mxu0 %v809
    %v885 = vpop.f32.mrb[0].mxu0
    %v886 = vadd.f32 0.0, %v885
    %v887 = vpop.f32.mrb[0].mxu0
    %v888 = vpop.f32.mrb[0].mxu0
    %v889 = vpop.f32.mrb[0].mxu0
    %890 = vdwg.mxu0
    %v891 = vadd.f32 %v806, %v845
    %v892 = vxor.u32 %v891, 2147483648
    %v893 = vmul.f32 %v892, 1.442695
    %v894 = vpow.pop %v893
    %v895 = vadd.f32 %v894, 1.0
    %v896 = vrcp.pop %v895
    %v897 = vmul.f32 1.0, %v896
    %v898 = vadd.f32 %v807, %v847
    %v899 = vxor.u32 %v898, 2147483648
    %v900 = vmul.f32 %v899, 1.442695
    %v901 = vpow.pop %v900
    %v902 = vadd.f32 %v901, 1.0
    %v903 = vrcp.pop %v902
    %v904 = vmul.f32 1.0, %v903
    %v905 = vadd.f32 %v886, %v456
    %v906 = vmul.f32 %v897, %v905
    %v907 = vadd.f32 %v808, %v906
    %v908 = vtanh.pop %v907
    %v909 = vsub.f32 1.0, %v904
    %v910 = vmul.f32 %v909, %v908
    %v911 = vmul.f32 %v904, %v802
    %v912 = vadd.f32 %v910, %v911
    %s913 = scalar_lea.vmem [#allocation10], 16
    %914 = vst [vmem:[%s913] sm:$0xff] %v912
    %s915 = scalar_lea.vmem [#allocation3], 72
    %v916 = vld [vmem:[%s915] sm:$0xff]
    %v917 = vld [vmem:[%s915 + $0x8] sm:$0xff]
    %v918 = vld [vmem:[%s915 + $0x10] sm:$0xff]
    %v919 = vpack.c.bf16 %v912, %v912
    %920 = vmatprep.subr.bf16.mxu0 %v544
    %921 = vmatpush1.bf16.msra.mxu0 %v543
    %922 = vmatprep.subr.bf16.mxu0 %v547
    %923 = vmatpush1.bf16.msra.mxu0 %v546
    %924 = vmatprep.subr.bf16.mxu0 %v550
    %925 = vmatpush1.bf16.msra.mxu0 %v549
    %926 = vmatprep.subr.bf16.mxu0 %v553
    %927 = vmatpush1.bf16.msra.mxu0 %v552
    %928 = vmatprep.subr.bf16.mxu0 %v556
    %929 = vmatpush1.bf16.msra.mxu0 %v555
    %930 = vmatprep.subr.bf16.mxu0 %v559
    %931 = vmatpush1.bf16.msra.mxu0 %v558
    %932 = vmatprep.subr.bf16.mxu0 %v562
    %933 = vmatpush1.bf16.msra.mxu0 %v561
    %934 = vmatprep.subr.bf16.mxu0 %v565
    %935 = vmatpush1.bf16.msra.mxu0 %v564
    %936 = vmatprep.subr.bf16.mxu0 0
    %937 = vmatpush1.bf16.msra.mxu0 0
    %938 = vmatprep.subr.bf16.mxu0 0
    %939 = vmatpush1.bf16.msra.mxu0 0
    %940 = vmatprep.subr.bf16.mxu0 0
    %941 = vmatpush1.bf16.msra.mxu0 0
    %942 = vmatprep.subr.bf16.mxu0 0
    %943 = vmatpush1.bf16.msra.mxu0 0
    %944 = vmatprep.subr.bf16.mxu0 0
    %945 = vmatpush1.bf16.msra.mxu0 0
    %946 = vmatprep.subr.bf16.mxu0 0
    %947 = vmatpush1.bf16.msra.mxu0 0
    %948 = vmatprep.subr.bf16.mxu0 0
    %949 = vmatpush1.bf16.msra.mxu0 0
    %950 = vmatprep.subr.bf16.mxu0 0
    %951 = vmatpush1.bf16.msra.mxu0 0
    %952 = vmatprep.mubr.bf16.mxu0 0
    %953 = vmatmul.mubr.bf16.gmra.mrb[0].mxu0 %v919
    %v954 = vpop.f32.mrb[0].mxu0
    %v955 = vadd.f32 0.0, %v954
    %v956 = vpop.f32.mrb[0].mxu0
    %v957 = vadd.f32 0.0, %v956
    %v958 = vpop.f32.mrb[0].mxu0
    %v959 = vpop.f32.mrb[0].mxu0
    %960 = vdwg.mxu0
    %961 = vmatprep.subr.bf16.mxu0 0
    %962 = vmatpush1.bf16.msra.mxu0 %v545
    %963 = vmatprep.subr.bf16.mxu0 0
    %964 = vmatpush1.bf16.msra.mxu0 %v548
    %965 = vmatprep.subr.bf16.mxu0 0
    %966 = vmatpush1.bf16.msra.mxu0 %v551
    %967 = vmatprep.subr.bf16.mxu0 0
    %968 = vmatpush1.bf16.msra.mxu0 %v554
    %969 = vmatprep.subr.bf16.mxu0 0
    %970 = vmatpush1.bf16.msra.mxu0 %v557
    %971 = vmatprep.subr.bf16.mxu0 0
    %972 = vmatpush1.bf16.msra.mxu0 %v560
    %973 = vmatprep.subr.bf16.mxu0 0
    %974 = vmatpush1.bf16.msra.mxu0 %v563
    %975 = vmatprep.subr.bf16.mxu0 0
    %976 = vmatpush1.bf16.msra.mxu0 %v566
    %977 = vmatprep.subr.bf16.mxu0 0
    %978 = vmatpush1.bf16.msra.mxu0 0
    %979 = vmatprep.subr.bf16.mxu0 0
    %980 = vmatpush1.bf16.msra.mxu0 0
    %981 = vmatprep.subr.bf16.mxu0 0
    %982 = vmatpush1.bf16.msra.mxu0 0
    %983 = vmatprep.subr.bf16.mxu0 0
    %984 = vmatpush1.bf16.msra.mxu0 0
    %985 = vmatprep.subr.bf16.mxu0 0
    %986 = vmatpush1.bf16.msra.mxu0 0
    %987 = vmatprep.subr.bf16.mxu0 0
    %988 = vmatpush1.bf16.msra.mxu0 0
    %989 = vmatprep.subr.bf16.mxu0 0
    %990 = vmatpush1.bf16.msra.mxu0 0
    %991 = vmatprep.subr.bf16.mxu0 0
    %992 = vmatpush1.bf16.msra.mxu0 0
    %993 = vmatprep.mubr.bf16.mxu0 0
    %994 = vmatmul.mubr.bf16.gmra.mrb[0].mxu0 %v919
    %v995 = vpop.f32.mrb[0].mxu0
    %v996 = vadd.f32 0.0, %v995
    %v997 = vpop.f32.mrb[0].mxu0
    %v998 = vpop.f32.mrb[0].mxu0
    %v999 = vpop.f32.mrb[0].mxu0
    %1000 = vdwg.mxu0
    %v1001 = vadd.f32 %v916, %v955
    %v1002 = vxor.u32 %v1001, 2147483648
    %v1003 = vmul.f32 %v1002, 1.442695
    %v1004 = vpow.pop %v1003
    %v1005 = vadd.f32 %v1004, 1.0
    %v1006 = vrcp.pop %v1005
    %v1007 = vmul.f32 1.0, %v1006
    %v1008 = vadd.f32 %v917, %v957
    %v1009 = vxor.u32 %v1008, 2147483648
    %v1010 = vmul.f32 %v1009, 1.442695
    %v1011 = vpow.pop %v1010
    %v1012 = vadd.f32 %v1011, 1.0
    %v1013 = vrcp.pop %v1012
    %v1014 = vmul.f32 1.0, %v1013
    %v1015 = vadd.f32 %v996, %v456
    %v1016 = vmul.f32 %v1007, %v1015
    %v1017 = vadd.f32 %v918, %v1016
    %v1018 = vtanh.pop %v1017
    %v1019 = vsub.f32 1.0, %v1014
    %v1020 = vmul.f32 %v1019, %v1018
    %v1021 = vmul.f32 %v1014, %v912
    %v1022 = vadd.f32 %v1020, %v1021
    %s1023 = scalar_lea.vmem [#allocation10], 24
    %1024 = vst [vmem:[%s1023] sm:$0xff] %v1022
    %s1025 = scalar_lea.vmem [#allocation3], 96
    %v1026 = vld [vmem:[%s1025] sm:$0xff]
    %v1027 = vld [vmem:[%s1025 + $0x8] sm:$0xff]
    %v1028 = vld [vmem:[%s1025 + $0x10] sm:$0xff]
    %v1029 = vpack.c.bf16 %v1022, %v1022
    %1030 = vmatprep.subr.bf16.mxu0 %v544
    %1031 = vmatpush1.bf16.msra.mxu0 %v543
    %1032 = vmatprep.subr.bf16.mxu0 %v547
    %1033 = vmatpush1.bf16.msra.mxu0 %v546
    %1034 = vmatprep.subr.bf16.mxu0 %v550
    %1035 = vmatpush1.bf16.msra.mxu0 %v549
    %1036 = vmatprep.subr.bf16.mxu0 %v553
    %1037 = vmatpush1.bf16.msra.mxu0 %v552
    %1038 = vmatprep.subr.bf16.mxu0 %v556
    %1039 = vmatpush1.bf16.msra.mxu0 %v555
    %1040 = vmatprep.subr.bf16.mxu0 %v559
    %1041 = vmatpush1.bf16.msra.mxu0 %v558
    %1042 = vmatprep.subr.bf16.mxu0 %v562
    %1043 = vmatpush1.bf16.msra.mxu0 %v561
    %1044 = vmatprep.subr.bf16.mxu0 %v565
    %1045 = vmatpush1.bf16.msra.mxu0 %v564
    %1046 = vmatprep.subr.bf16.mxu0 0
    %1047 = vmatpush1.bf16.msra.mxu0 0
    %1048 = vmatprep.subr.bf16.mxu0 0
    %1049 = vmatpush1.bf16.msra.mxu0 0
    %1050 = vmatprep.subr.bf16.mxu0 0
    %1051 = vmatpush1.bf16.msra.mxu0 0
    %1052 = vmatprep.subr.bf16.mxu0 0
    %1053 = vmatpush1.bf16.msra.mxu0 0
    %1054 = vmatprep.subr.bf16.mxu0 0
    %1055 = vmatpush1.bf16.msra.mxu0 0
    %1056 = vmatprep.subr.bf16.mxu0 0
    %1057 = vmatpush1.bf16.msra.mxu0 0
    %1058 = vmatprep.subr.bf16.mxu0 0
    %1059 = vmatpush1.bf16.msra.mxu0 0
    %1060 = vmatprep.subr.bf16.mxu0 0
    %1061 = vmatpush1.bf16.msra.mxu0 0
    %1062 = vmatprep.mubr.bf16.mxu0 0
    %1063 = vmatmul.mubr.bf16.gmra.mrb[0].mxu0 %v1029
    %v1064 = vpop.f32.mrb[0].mxu0
    %v1065 = vadd.f32 0.0, %v1064
    %v1066 = vpop.f32.mrb[0].mxu0
    %v1067 = vadd.f32 0.0, %v1066
    %v1068 = vpop.f32.mrb[0].mxu0
    %v1069 = vpop.f32.mrb[0].mxu0
    %1070 = vdwg.mxu0
    %1071 = vmatprep.subr.bf16.mxu0 0
    %1072 = vmatpush1.bf16.msra.mxu0 %v545
    %1073 = vmatprep.subr.bf16.mxu0 0
    %1074 = vmatpush1.bf16.msra.mxu0 %v548
    %1075 = vmatprep.subr.bf16.mxu0 0
    %1076 = vmatpush1.bf16.msra.mxu0 %v551
    %1077 = vmatprep.subr.bf16.mxu0 0
    %1078 = vmatpush1.bf16.msra.mxu0 %v554
    %1079 = vmatprep.subr.bf16.mxu0 0
    %1080 = vmatpush1.bf16.msra.mxu0 %v557
    %1081 = vmatprep.subr.bf16.mxu0 0
    %1082 = vmatpush1.bf16.msra.mxu0 %v560
    %1083 = vmatprep.subr.bf16.mxu0 0
    %1084 = vmatpush1.bf16.msra.mxu0 %v563
    %1085 = vmatprep.subr.bf16.mxu0 0
    %1086 = vmatpush1.bf16.msra.mxu0 %v566
    %1087 = vmatprep.subr.bf16.mxu0 0
    %1088 = vmatpush1.bf16.msra.mxu0 0
    %1089 = vmatprep.subr.bf16.mxu0 0
    %1090 = vmatpush1.bf16.msra.mxu0 0
    %1091 = vmatprep.subr.bf16.mxu0 0
    %1092 = vmatpush1.bf16.msra.mxu0 0
    %1093 = vmatprep.subr.bf16.mxu0 0
    %1094 = vmatpush1.bf16.msra.mxu0 0
    %1095 = vmatprep.subr.bf16.mxu0 0
    %1096 = vmatpush1.bf16.msra.mxu0 0
    %1097 = vmatprep.subr.bf16.mxu0 0
    %1098 = vmatpush1.bf16.msra.mxu0 0
    %1099 = vmatprep.subr.bf16.mxu0 0
    %1100 = vmatpush1.bf16.msra.mxu0 0
    %1101 = vmatprep.subr.bf16.mxu0 0
    %1102 = vmatpush1.bf16.msra.mxu0 0
    %1103 = vmatprep.mubr.bf16.mxu0 0
    %1104 = vmatmul.mubr.bf16.gmra.mrb[0].mxu0 %v1029
    %v1105 = vpop.f32.mrb[0].mxu0
    %v1106 = vadd.f32 0.0, %v1105
    %v1107 = vpop.f32.mrb[0].mxu0
    %v1108 = vpop.f32.mrb[0].mxu0
    %v1109 = vpop.f32.mrb[0].mxu0
    %1110 = vdwg.mxu0
    %v1111 = vadd.f32 %v1026, %v1065
    %v1112 = vxor.u32 %v1111, 2147483648
    %v1113 = vmul.f32 %v1112, 1.442695
    %v1114 = vpow.pop %v1113
    %v1115 = vadd.f32 %v1114, 1.0
    %v1116 = vrcp.pop %v1115
    %v1117 = vmul.f32 1.0, %v1116
    %v1118 = vadd.f32 %v1027, %v1067
    %v1119 = vxor.u32 %v1118, 2147483648
    %v1120 = vmul.f32 %v1119, 1.442695
    %v1121 = vpow.pop %v1120
    %v1122 = vadd.f32 %v1121, 1.0
    %v1123 = vrcp.pop %v1122
    %v1124 = vmul.f32 1.0, %v1123
    %v1125 = vadd.f32 %v1106, %v456
    %v1126 = vmul.f32 %v1117, %v1125
    %v1127 = vadd.f32 %v1028, %v1126
    %v1128 = vtanh.pop %v1127
    %v1129 = vsub.f32 1.0, %v1124
    %v1130 = vmul.f32 %v1129, %v1128
    %v1131 = vmul.f32 %v1124, %v1022
    %v1132 = vadd.f32 %v1130, %v1131
    %s1133 = scalar_lea.vmem [#allocation10], 32
    %1134 = vst [vmem:[%s1133] sm:$0xff] %v1132
    %s1135 = scalar_lea.vmem [#allocation3], 120
    %v1136 = vld [vmem:[%s1135] sm:$0xff]
    %v1137 = vld [vmem:[%s1135 + $0x8] sm:$0xff]
    %v1138 = vld [vmem:[%s1135 + $0x10] sm:$0xff]
    %v1139 = vpack.c.bf16 %v1132, %v1132
    %1140 = vmatprep.subr.bf16.mxu0 %v544
    %1141 = vmatpush1.bf16.msra.mxu0 %v543
    %1142 = vmatprep.subr.bf16.mxu0 %v547
    %1143 = vmatpush1.bf16.msra.mxu0 %v546
    %1144 = vmatprep.subr.bf16.mxu0 %v550
    %1145 = vmatpush1.bf16.msra.mxu0 %v549
    %1146 = vmatprep.subr.bf16.mxu0 %v553
    %1147 = vmatpush1.bf16.msra.mxu0 %v552
    %1148 = vmatprep.subr.bf16.mxu0 %v556
    %1149 = vmatpush1.bf16.msra.mxu0 %v555
    %1150 = vmatprep.subr.bf16.mxu0 %v559
    %1151 = vmatpush1.bf16.msra.mxu0 %v558
    %1152 = vmatprep.subr.bf16.mxu0 %v562
    %1153 = vmatpush1.bf16.msra.mxu0 %v561
    %1154 = vmatprep.subr.bf16.mxu0 %v565
    %1155 = vmatpush1.bf16.msra.mxu0 %v564
    %1156 = vmatprep.subr.bf16.mxu0 0
    %1157 = vmatpush1.bf16.msra.mxu0 0
    %1158 = vmatprep.subr.bf16.mxu0 0
    %1159 = vmatpush1.bf16.msra.mxu0 0
    %1160 = vmatprep.subr.bf16.mxu0 0
    %1161 = vmatpush1.bf16.msra.mxu0 0
    %1162 = vmatprep.subr.bf16.mxu0 0
    %1163 = vmatpush1.bf16.msra.mxu0 0
    %1164 = vmatprep.subr.bf16.mxu0 0
    %1165 = vmatpush1.bf16.msra.mxu0 0
    %1166 = vmatprep.subr.bf16.mxu0 0
    %1167 = vmatpush1.bf16.msra.mxu0 0
    %1168 = vmatprep.subr.bf16.mxu0 0
    %1169 = vmatpush1.bf16.msra.mxu0 0
    %1170 = vmatprep.subr.bf16.mxu0 0
    %1171 = vmatpush1.bf16.msra.mxu0 0
    %1172 = vmatprep.mubr.bf16.mxu0 0
    %1173 = vmatmul.mubr.bf16.gmra.mrb[0].mxu0 %v1139
    %v1174 = vpop.f32.mrb[0].mxu0
    %v1175 = vadd.f32 0.0, %v1174
    %v1176 = vpop.f32.mrb[0].mxu0
    %v1177 = vadd.f32 0.0, %v1176
    %v1178 = vpop.f32.mrb[0].mxu0
    %v1179 = vpop.f32.mrb[0].mxu0
    %1180 = vdwg.mxu0
    %1181 = vmatprep.subr.bf16.mxu0 0
    %1182 = vmatpush1.bf16.msra.mxu0 %v545
    %1183 = vmatprep.subr.bf16.mxu0 0
    %1184 = vmatpush1.bf16.msra.mxu0 %v548
    %1185 = vmatprep.subr.bf16.mxu0 0
    %1186 = vmatpush1.bf16.msra.mxu0 %v551
    %1187 = vmatprep.subr.bf16.mxu0 0
    %1188 = vmatpush1.bf16.msra.mxu0 %v554
    %1189 = vmatprep.subr.bf16.mxu0 0
    %1190 = vmatpush1.bf16.msra.mxu0 %v557
    %1191 = vmatprep.subr.bf16.mxu0 0
    %1192 = vmatpush1.bf16.msra.mxu0 %v560
    %1193 = vmatprep.subr.bf16.mxu0 0
    %1194 = vmatpush1.bf16.msra.mxu0 %v563
    %1195 = vmatprep.subr.bf16.mxu0 0
    %1196 = vmatpush1.bf16.msra.mxu0 %v566
    %1197 = vmatprep.subr.bf16.mxu0 0
    %1198 = vmatpush1.bf16.msra.mxu0 0
    %1199 = vmatprep.subr.bf16.mxu0 0
    %1200 = vmatpush1.bf16.msra.mxu0 0
    %1201 = vmatprep.subr.bf16.mxu0 0
    %1202 = vmatpush1.bf16.msra.mxu0 0
    %1203 = vmatprep.subr.bf16.mxu0 0
    %1204 = vmatpush1.bf16.msra.mxu0 0
    %1205 = vmatprep.subr.bf16.mxu0 0
    %1206 = vmatpush1.bf16.msra.mxu0 0
    %1207 = vmatprep.subr.bf16.mxu0 0
    %1208 = vmatpush1.bf16.msra.mxu0 0
    %1209 = vmatprep.subr.bf16.mxu0 0
    %1210 = vmatpush1.bf16.msra.mxu0 0
    %1211 = vmatprep.subr.bf16.mxu0 0
    %1212 = vmatpush1.bf16.msra.mxu0 0
    %1213 = vmatprep.mubr.bf16.mxu0 0
    %1214 = vmatmul.mubr.bf16.gmra.mrb[0].mxu0 %v1139
    %v1215 = vpop.f32.mrb[0].mxu0
    %v1216 = vadd.f32 0.0, %v1215
    %v1217 = vpop.f32.mrb[0].mxu0
    %v1218 = vpop.f32.mrb[0].mxu0
    %v1219 = vpop.f32.mrb[0].mxu0
    %1220 = vdwg.mxu0
    %v1221 = vadd.f32 %v1136, %v1175
    %v1222 = vxor.u32 %v1221, 2147483648
    %v1223 = vmul.f32 %v1222, 1.442695
    %v1224 = vpow.pop %v1223
    %v1225 = vadd.f32 %v1224, 1.0
    %v1226 = vrcp.pop %v1225
    %v1227 = vmul.f32 1.0, %v1226
    %v1228 = vadd.f32 %v1137, %v1177
    %v1229 = vxor.u32 %v1228, 2147483648
    %v1230 = vmul.f32 %v1229, 1.442695
    %v1231 = vpow.pop %v1230
    %v1232 = vadd.f32 %v1231, 1.0
    %v1233 = vrcp.pop %v1232
    %v1234 = vmul.f32 1.0, %v1233
    %v1235 = vadd.f32 %v1216, %v456
    %v1236 = vmul.f32 %v1227, %v1235
    %v1237 = vadd.f32 %v1138, %v1236
    %v1238 = vtanh.pop %v1237
    %v1239 = vsub.f32 1.0, %v1234
    %v1240 = vmul.f32 %v1239, %v1238
    %v1241 = vmul.f32 %v1234, %v1132
    %v1242 = vadd.f32 %v1240, %v1241
    %s1243 = scalar_lea.vmem [#allocation10], 40
    %1244 = vst [vmem:[%s1243] sm:$0xff] %v1242
    %s1245 = scalar_lea.vmem [#allocation3], 144
    %v1246 = vld [vmem:[%s1245] sm:$0xff]
    %v1247 = vld [vmem:[%s1245 + $0x8] sm:$0xff]
    %v1248 = vld [vmem:[%s1245 + $0x10] sm:$0xff]
    %v1249 = vpack.c.bf16 %v1242, %v1242
    %1250 = vmatprep.subr.bf16.mxu0 %v544
    %1251 = vmatpush1.bf16.msra.mxu0 %v543
    %1252 = vmatprep.subr.bf16.mxu0 %v547
    %1253 = vmatpush1.bf16.msra.mxu0 %v546
    %1254 = vmatprep.subr.bf16.mxu0 %v550
    %1255 = vmatpush1.bf16.msra.mxu0 %v549
    %1256 = vmatprep.subr.bf16.mxu0 %v553
    %1257 = vmatpush1.bf16.msra.mxu0 %v552
    %1258 = vmatprep.subr.bf16.mxu0 %v556
    %1259 = vmatpush1.bf16.msra.mxu0 %v555
    %1260 = vmatprep.subr.bf16.mxu0 %v559
    %1261 = vmatpush1.bf16.msra.mxu0 %v558
    %1262 = vmatprep.subr.bf16.mxu0 %v562
    %1263 = vmatpush1.bf16.msra.mxu0 %v561
    %1264 = vmatprep.subr.bf16.mxu0 %v565
    %1265 = vmatpush1.bf16.msra.mxu0 %v564
    %1266 = vmatprep.subr.bf16.mxu0 0
    %1267 = vmatpush1.bf16.msra.mxu0 0
    %1268 = vmatprep.subr.bf16.mxu0 0
    %1269 = vmatpush1.bf16.msra.mxu0 0
    %1270 = vmatprep.subr.bf16.mxu0 0
    %1271 = vmatpush1.bf16.msra.mxu0 0
    %1272 = vmatprep.subr.bf16.mxu0 0
    %1273 = vmatpush1.bf16.msra.mxu0 0
    %1274 = vmatprep.subr.bf16.mxu0 0
    %1275 = vmatpush1.bf16.msra.mxu0 0
    %1276 = vmatprep.subr.bf16.mxu0 0
    %1277 = vmatpush1.bf16.msra.mxu0 0
    %1278 = vmatprep.subr.bf16.mxu0 0
    %1279 = vmatpush1.bf16.msra.mxu0 0
    %1280 = vmatprep.subr.bf16.mxu0 0
    %1281 = vmatpush1.bf16.msra.mxu0 0
    %1282 = vmatprep.mubr.bf16.mxu0 0
    %1283 = vmatmul.mubr.bf16.gmra.mrb[0].mxu0 %v1249
    %v1284 = vpop.f32.mrb[0].mxu0
    %v1285 = vadd.f32 0.0, %v1284
    %v1286 = vpop.f32.mrb[0].mxu0
    %v1287 = vadd.f32 0.0, %v1286
    %v1288 = vpop.f32.mrb[0].mxu0
    %v1289 = vpop.f32.mrb[0].mxu0
    %1290 = vdwg.mxu0
    %1291 = vmatprep.subr.bf16.mxu0 0
    %1292 = vmatpush1.bf16.msra.mxu0 %v545
    %1293 = vmatprep.subr.bf16.mxu0 0
    %1294 = vmatpush1.bf16.msra.mxu0 %v548
    %1295 = vmatprep.subr.bf16.mxu0 0
    %1296 = vmatpush1.bf16.msra.mxu0 %v551
    %1297 = vmatprep.subr.bf16.mxu0 0
    %1298 = vmatpush1.bf16.msra.mxu0 %v554
    %1299 = vmatprep.subr.bf16.mxu0 0
    %1300 = vmatpush1.bf16.msra.mxu0 %v557
    %1301 = vmatprep.subr.bf16.mxu0 0
    %1302 = vmatpush1.bf16.msra.mxu0 %v560
    %1303 = vmatprep.subr.bf16.mxu0 0
    %1304 = vmatpush1.bf16.msra.mxu0 %v563
    %1305 = vmatprep.subr.bf16.mxu0 0
    %1306 = vmatpush1.bf16.msra.mxu0 %v566
    %1307 = vmatprep.subr.bf16.mxu0 0
    %1308 = vmatpush1.bf16.msra.mxu0 0
    %1309 = vmatprep.subr.bf16.mxu0 0
    %1310 = vmatpush1.bf16.msra.mxu0 0
    %1311 = vmatprep.subr.bf16.mxu0 0
    %1312 = vmatpush1.bf16.msra.mxu0 0
    %1313 = vmatprep.subr.bf16.mxu0 0
    %1314 = vmatpush1.bf16.msra.mxu0 0
    %1315 = vmatprep.subr.bf16.mxu0 0
    %1316 = vmatpush1.bf16.msra.mxu0 0
    %1317 = vmatprep.subr.bf16.mxu0 0
    %1318 = vmatpush1.bf16.msra.mxu0 0
    %1319 = vmatprep.subr.bf16.mxu0 0
    %1320 = vmatpush1.bf16.msra.mxu0 0
    %1321 = vmatprep.subr.bf16.mxu0 0
    %1322 = vmatpush1.bf16.msra.mxu0 0
    %1323 = vmatprep.mubr.bf16.mxu0 0
    %1324 = vmatmul.mubr.bf16.gmra.mrb[0].mxu0 %v1249
    %v1325 = vpop.f32.mrb[0].mxu0
    %v1326 = vadd.f32 0.0, %v1325
    %v1327 = vpop.f32.mrb[0].mxu0
    %v1328 = vpop.f32.mrb[0].mxu0
    %v1329 = vpop.f32.mrb[0].mxu0
    %1330 = vdwg.mxu0
    %v1331 = vadd.f32 %v1246, %v1285
    %v1332 = vxor.u32 %v1331, 2147483648
    %v1333 = vmul.f32 %v1332, 1.442695
    %v1334 = vpow.pop %v1333
    %v1335 = vadd.f32 %v1334, 1.0
    %v1336 = vrcp.pop %v1335
    %v1337 = vmul.f32 1.0, %v1336
    %v1338 = vadd.f32 %v1247, %v1287
    %v1339 = vxor.u32 %v1338, 2147483648
    %v1340 = vmul.f32 %v1339, 1.442695
    %v1341 = vpow.pop %v1340
    %v1342 = vadd.f32 %v1341, 1.0
    %v1343 = vrcp.pop %v1342
    %v1344 = vmul.f32 1.0, %v1343
    %v1345 = vadd.f32 %v1326, %v456
    %v1346 = vmul.f32 %v1337, %v1345
    %v1347 = vadd.f32 %v1248, %v1346
    %v1348 = vtanh.pop %v1347
    %v1349 = vsub.f32 1.0, %v1344
    %v1350 = vmul.f32 %v1349, %v1348
    %v1351 = vmul.f32 %v1344, %v1242
    %v1352 = vadd.f32 %v1350, %v1351
    %s1353 = scalar_lea.vmem [#allocation10], 48
    %1354 = vst [vmem:[%s1353] sm:$0xff] %v1352
    %s1355 = scalar_lea.vmem [#allocation3], 168
    %v1356 = vld [vmem:[%s1355] sm:$0xff]
    %v1357 = vld [vmem:[%s1355 + $0x8] sm:$0xff]
    %v1358 = vld [vmem:[%s1355 + $0x10] sm:$0xff]
    %v1359 = vpack.c.bf16 %v1352, %v1352
    %1360 = vmatprep.subr.bf16.mxu0 %v544
    %1361 = vmatpush1.bf16.msra.mxu0 %v543
    %1362 = vmatprep.subr.bf16.mxu0 %v547
    %1363 = vmatpush1.bf16.msra.mxu0 %v546
    %1364 = vmatprep.subr.bf16.mxu0 %v550
    %1365 = vmatpush1.bf16.msra.mxu0 %v549
    %1366 = vmatprep.subr.bf16.mxu0 %v553
    %1367 = vmatpush1.bf16.msra.mxu0 %v552
    %1368 = vmatprep.subr.bf16.mxu0 %v556
    %1369 = vmatpush1.bf16.msra.mxu0 %v555
    %1370 = vmatprep.subr.bf16.mxu0 %v559
    %1371 = vmatpush1.bf16.msra.mxu0 %v558
    %1372 = vmatprep.subr.bf16.mxu0 %v562
    %1373 = vmatpush1.bf16.msra.mxu0 %v561
    %1374 = vmatprep.subr.bf16.mxu0 %v565
    %1375 = vmatpush1.bf16.msra.mxu0 %v564
    %1376 = vmatprep.subr.bf16.mxu0 0
    %1377 = vmatpush1.bf16.msra.mxu0 0
    %1378 = vmatprep.subr.bf16.mxu0 0
    %1379 = vmatpush1.bf16.msra.mxu0 0
    %1380 = vmatprep.subr.bf16.mxu0 0
    %1381 = vmatpush1.bf16.msra.mxu0 0
    %1382 = vmatprep.subr.bf16.mxu0 0
    %1383 = vmatpush1.bf16.msra.mxu0 0
    %1384 = vmatprep.subr.bf16.mxu0 0
    %1385 = vmatpush1.bf16.msra.mxu0 0
    %1386 = vmatprep.subr.bf16.mxu0 0
    %1387 = vmatpush1.bf16.msra.mxu0 0
    %1388 = vmatprep.subr.bf16.mxu0 0
    %1389 = vmatpush1.bf16.msra.mxu0 0
    %1390 = vmatprep.subr.bf16.mxu0 0
    %1391 = vmatpush1.bf16.msra.mxu0 0
    %1392 = vmatprep.mubr.bf16.mxu0 0
    %1393 = vmatmul.mubr.bf16.gmra.mrb[0].mxu0 %v1359
    %v1394 = vpop.f32.mrb[0].mxu0
    %v1395 = vadd.f32 0.0, %v1394
    %v1396 = vpop.f32.mrb[0].mxu0
    %v1397 = vadd.f32 0.0, %v1396
    %v1398 = vpop.f32.mrb[0].mxu0
    %v1399 = vpop.f32.mrb[0].mxu0
    %1400 = vdwg.mxu0
    %1401 = vmatprep.subr.bf16.mxu0 0
    %1402 = vmatpush1.bf16.msra.mxu0 %v545
    %1403 = vmatprep.subr.bf16.mxu0 0
    %1404 = vmatpush1.bf16.msra.mxu0 %v548
    %1405 = vmatprep.subr.bf16.mxu0 0
    %1406 = vmatpush1.bf16.msra.mxu0 %v551
    %1407 = vmatprep.subr.bf16.mxu0 0
    %1408 = vmatpush1.bf16.msra.mxu0 %v554
    %1409 = vmatprep.subr.bf16.mxu0 0
    %1410 = vmatpush1.bf16.msra.mxu0 %v557
    %1411 = vmatprep.subr.bf16.mxu0 0
    %1412 = vmatpush1.bf16.msra.mxu0 %v560
    %1413 = vmatprep.subr.bf16.mxu0 0
    %1414 = vmatpush1.bf16.msra.mxu0 %v563
    %1415 = vmatprep.subr.bf16.mxu0 0
    %1416 = vmatpush1.bf16.msra.mxu0 %v566
    %1417 = vmatprep.subr.bf16.mxu0 0
    %1418 = vmatpush1.bf16.msra.mxu0 0
    %1419 = vmatprep.subr.bf16.mxu0 0
    %1420 = vmatpush1.bf16.msra.mxu0 0
    %1421 = vmatprep.subr.bf16.mxu0 0
    %1422 = vmatpush1.bf16.msra.mxu0 0
    %1423 = vmatprep.subr.bf16.mxu0 0
    %1424 = vmatpush1.bf16.msra.mxu0 0
    %1425 = vmatprep.subr.bf16.mxu0 0
    %1426 = vmatpush1.bf16.msra.mxu0 0
    %1427 = vmatprep.subr.bf16.mxu0 0
    %1428 = vmatpush1.bf16.msra.mxu0 0
    %1429 = vmatprep.subr.bf16.mxu0 0
    %1430 = vmatpush1.bf16.msra.mxu0 0
    %1431 = vmatprep.subr.bf16.mxu0 0
    %1432 = vmatpush1.bf16.msra.mxu0 0
    %1433 = vmatprep.mubr.bf16.mxu0 0
    %1434 = vmatmul.mubr.bf16.gmra.mrb[0].mxu0 %v1359
    %v1435 = vpop.f32.mrb[0].mxu0
    %v1436 = vadd.f32 0.0, %v1435
    %v1437 = vpop.f32.mrb[0].mxu0
    %v1438 = vpop.f32.mrb[0].mxu0
    %v1439 = vpop.f32.mrb[0].mxu0
    %1440 = vdwg.mxu0
    %v1441 = vadd.f32 %v1356, %v1395
    %v1442 = vxor.u32 %v1441, 2147483648
    %v1443 = vmul.f32 %v1442, 1.442695
    %v1444 = vpow.pop %v1443
    %v1445 = vadd.f32 %v1444, 1.0
    %v1446 = vrcp.pop %v1445
    %v1447 = vmul.f32 1.0, %v1446
    %v1448 = vadd.f32 %v1357, %v1397
    %v1449 = vxor.u32 %v1448, 2147483648
    %v1450 = vmul.f32 %v1449, 1.442695
    %v1451 = vpow.pop %v1450
    %v1452 = vadd.f32 %v1451, 1.0
    %v1453 = vrcp.pop %v1452
    %v1454 = vmul.f32 1.0, %v1453
    %v1455 = vadd.f32 %v1436, %v456
    %v1456 = vmul.f32 %v1447, %v1455
    %v1457 = vadd.f32 %v1358, %v1456
    %v1458 = vtanh.pop %v1457
    %v1459 = vsub.f32 1.0, %v1454
    %v1460 = vmul.f32 %v1459, %v1458
    %v1461 = vmul.f32 %v1454, %v1352
    %v1462 = vadd.f32 %v1460, %v1461
    %s1463 = scalar_lea.vmem [#allocation10], 56
    %1464 = vst [vmem:[%s1463] sm:$0xff] %v1462
    %1465 = vst [vmem:[#allocation2] sm:$0xff] %v1462
    // Predicated region
    $region38: #{tpu_custom_call.1} parent=1 // pred_check
      _
    $region39: #{tpu_custom_call.1} parent=1 // pred_check_branch
      %1467 = sbr.rel (0) target = $region41
    $region40: #{tpu_custom_call.1} parent=1 // pred_region
      %s1469 = ssub.s32 1024, 1024
      %1470 = vsyncadd [#allocation6], %s1469
      %s1471 = sshll.u32 [#allocation10], 4
      %s1472 = int_to_ptr.vmem [resolvable:$true] %s1471
      %1477 = dma.vmem_to_hbm [thread:$0]  %s1472, 1024, %s5, [#allocation6], 128, 128, 8
    $region41: #{tpu_custom_call.1} parent=1 // pred_fallthru
      _
    // Predicated region
    $region42: #{tpu_custom_call.1} parent=1 // pred_check
      _
    $region43: #{tpu_custom_call.1} parent=1 // pred_check_branch
      %1479 = sbr.rel (0) target = $region45
    $region44: #{tpu_custom_call.1} parent=1 // pred_region
      %1480 = dma.done [#allocation6], 1024
    $region45: #{tpu_custom_call.1} parent=1 // pred_fallthru
      _
    %1481 = vsyncpa [#allocation5], 1
    %1482 = vsyncpa [#allocation8], 1
    %1483 = vsyncpa [#allocation6], 1

</llo_original>
